<compile_context>
chip_gen: v7x
topology: tpu7x:2x2x1
jax: 0.10.0
libtpu: 0.0.40
codegen_flags: <defaults>
</compile_context>

<pallas_src>
import functools

import jax
import jax.numpy as jnp
from jax import lax
from jax.experimental import pallas as pl
from jax.experimental.pallas import tpu as pltpu

BN_EPS = 1e-5


# --------------------------------------------------------------------------
# Hardware-aware configuration
# --------------------------------------------------------------------------
def _is_v7x():
    try:
        return "v7" in jax.devices()[0].device_kind.lower()
    except Exception:
        return False


def _tpu_vmem_capacity_bytes():
    try:
        return int(pltpu.get_tpu_info().vmem_capacity_bytes)
    except Exception:
        pass
    return 64 * 1024 * 1024 if _is_v7x() else 128 * 1024 * 1024


def _config(n_pad):
    cap = _tpu_vmem_capacity_bytes()
    big_part = cap >= 100 * 1024 * 1024          # v5e / v6e / v5p: 128 MiB
    vmem_limit = (96 if big_part else 40) * 1024 * 1024
    candidates = (1024, 512, 256, 128) if big_part else (512, 256, 128)
    tile = next((c for c in candidates if n_pad % c == 0), 128)
    # v7x: make sure there are >= 2 row tiles so both TensorCores get work.
    if _is_v7x() and tile > 128 and n_pad // tile < 2:
        tile = max(128, tile // 2)
    return tile, vmem_limit


def _row_semantics(num_i):
    if _is_v7x() and num_i >= 2 and hasattr(pltpu, "CORE_PARALLEL"):
        return pltpu.CORE_PARALLEL, pltpu.ARBITRARY
    return "parallel", "arbitrary"


# --------------------------------------------------------------------------
# Kernels
# --------------------------------------------------------------------------
def xw1_kernel(x_ref, w1_ref, dinv_ref, y_ref):
    """Y1[i] = dinv[i] * (X[i] @ W1)  (transform-first, done once)."""
    xw = jnp.dot(x_ref[...], w1_ref[...], preferred_element_type=jnp.float32)
    y_ref[...] = (dinv_ref[...] * xw).astype(jnp.bfloat16)


def gcn1_kernel(a_ref, y_ref, dinv_ref, h1_ref, stats_ref, acc_ref, *,
                tk, resident):
    """H1 tile = dinv[i] * sum_k C[i,k] @ Y1[k]; also BN partial sums."""
    k = pl.program_id(1)

    @pl.when(k == 0)
    def _():
        acc_ref[...] = jnp.zeros_like(acc_ref)

    if resident:
        start = pl.multiple_of(k * tk, tk)
        y = y_ref[pl.ds(start, tk), :]
    else:
        y = y_ref[...]

    # A is exact int8 (A+I) counts; upcast on the fly (i8 -> f32 -> bf16).
    a = a_ref[...].astype(jnp.float32).astype(jnp.bfloat16)
    acc_ref[...] += jnp.dot(a, y, preferred_element_type=jnp.float32)

    @pl.when(k == pl.num_programs(1) - 1)
    def _():
        h1 = dinv_ref[...] * acc_ref[...]            # fold D^{-1/2} row scale
        # NOTE: gcn1's bias b1 is intentionally omitted (cancelled by BN mean).
        stats_ref[...] = jnp.concatenate(
            [jnp.sum(h1, axis=0, keepdims=True),
             jnp.sum(h1 * h1, axis=0, keepdims=True)], axis=0)[None]
        h1_ref[...] = h1.astype(jnp.bfloat16)


def bn_relu_kernel(h1_ref, scale_ref, shift_ref, dinv_ref, y_ref):
    """Y2 = dinv * relu(H1 * scale + shift), computed once (hoisted from pass 2)."""
    hn = h1_ref[...].astype(jnp.float32) * scale_ref[...] + shift_ref[...]
    hn = jnp.maximum(hn, 0.0)
    # TODO(synk): nn.Dropout(0.3) applied as identity (inference-mode forward).
    y_ref[...] = (dinv_ref[...] * hn).astype(jnp.bfloat16)


def gcn2_kernel(a_ref, y_ref, dinv_ref, w2_ref, b2_ref, out_ref, acc_ref, *,
                tk, resident):
    """OUT tile = (dinv[i] * sum_k C[i,k] @ Y2[k]) @ W2 + b2."""
    k = pl.program_id(1)

    @pl.when(k == 0)
    def _():
        acc_ref[...] = jnp.zeros_like(acc_ref)

    if resident:
        start = pl.multiple_of(k * tk, tk)
        y = y_ref[pl.ds(start, tk), :]
    else:
        y = y_ref[...]

    a = a_ref[...].astype(jnp.float32).astype(jnp.bfloat16)
    acc_ref[...] += jnp.dot(a, y, preferred_element_type=jnp.float32)

    @pl.when(k == pl.num_programs(1) - 1)
    def _():
        agg = (dinv_ref[...] * acc_ref[...]).astype(jnp.bfloat16)
        out_ref[...] = jnp.dot(agg, w2_ref[...],
                               preferred_element_type=jnp.float32) + b2_ref[...]


# --------------------------------------------------------------------------
# Host-side preparation (cache these across forwards)
# --------------------------------------------------------------------------
def _round_up(x, m):
    return ((x + m - 1) // m) * m


def prepare_graph(edge_index, num_nodes):
    """Per-graph cache: int8 (A+I) counts (padded) and D^{-1/2} column."""
    n = num_nodes
    src, dst = edge_index[0], edge_index[1]
    counts = jnp.zeros((n, n), jnp.float32).at[dst, src].add(1.0)
    # PyG gcn_norm / add_remaining_self_loops: add a self-loop only if missing.
    diag = jnp.diagonal(counts)
    idx = jnp.arange(n)
    counts = counts.at[idx, idx].set(jnp.where(diag > 0.0, diag, 1.0))
    deg = jnp.sum(counts, axis=1)
    dinv = jnp.where(deg > 0.0, lax.rsqrt(deg), 0.0)

    n_pad = _round_up(n, 128)
    a_i8 = jnp.zeros((n_pad, n_pad), jnp.int8).at[:n, :n].set(
        counts.astype(jnp.int8))
    dinv_col = jnp.zeros((n_pad, 1), jnp.float32).at[:n, 0].set(dinv)
    return {"a": a_i8, "dinv": dinv_col, "n": n, "n_pad": n_pad}


def prepare_params(params, input_dim, hidden_dim):
    """Per-parameter cache: lane-dense padded bf16 weights / f32 BN params."""
    din_pad = _round_up(input_dim, 128)
    h_pad = _round_up(hidden_dim, 128)
    w1 = jnp.zeros((din_pad, h_pad), jnp.bfloat16).at[:input_dim, :hidden_dim].set(
        params["w1"].astype(jnp.bfloat16))
    w2 = jnp.zeros((h_pad, h_pad), jnp.bfloat16).at[:hidden_dim, :hidden_dim].set(
        params["w2"].astype(jnp.bfloat16))
    gamma = jnp.zeros((1, h_pad), jnp.float32).at[0, :hidden_dim].set(params["gamma"])
    beta = jnp.zeros((1, h_pad), jnp.float32).at[0, :hidden_dim].set(params["beta"])
    b2 = jnp.zeros((1, h_pad), jnp.float32).at[0, :hidden_dim].set(params["b2"])
    return {"w1": w1, "w2": w2, "gamma": gamma, "beta": beta, "b2": b2,
            "din": input_dim, "h": hidden_dim}


# --------------------------------------------------------------------------
# Forward
# --------------------------------------------------------------------------
@functools.partial(jax.jit, static_argnames=("n", "din", "h"))
def _forward(x, a, dinv, w1, w2, gamma, beta, b2, *, n, din, h):
    n_pad = a.shape[0]
    din_pad, h_pad = w1.shape

    tile, vmem_limit = _config(n_pad)
    tm = tk = tile
    num_i = n_pad // tm
    num_k = n_pad // tk
    row_sem, red_sem = _row_semantics(num_i)

    cp1 = pltpu.CompilerParams(dimension_semantics=(row_sem,),
                               vmem_limit_bytes=vmem_limit)
    cp2 = pltpu.CompilerParams(dimension_semantics=(row_sem, red_sem),
                               vmem_limit_bytes=vmem_limit)

    # Keep the transformed node features VMEM-resident across the whole grid
    # iff a double-buffered copy comfortably fits (gated for v7x's 64 MiB).
    resident = 2 * n_pad * h_pad * 2 <= vmem_limit // 3

    x_p = jnp.zeros((n_pad, din_pad), jnp.bfloat16).at[:n, :din].set(
        x.astype(jnp.bfloat16))

    # ---- Transform-first: Y1 = D^{-1/2} * (X @ W1), computed once ---------
    # TODO(synk): when Din << H an aggregate-first ordering streams fewer bytes
    # per k-tile; padded demo dims make the two identical.
    y1 = pl.pallas_call(
        xw1_kernel,
        grid=(num_i,),
        in_specs=[
            pl.BlockSpec((tm, din_pad), lambda i: (i, 0)),
            pl.BlockSpec((din_pad, h_pad), lambda i: (0, 0)),
            pl.BlockSpec((tm, 1), lambda i: (i, 0)),
        ],
        out_specs=pl.BlockSpec((tm, h_pad), lambda i: (i, 0)),
        out_shape=jax.ShapeDtypeStruct((n_pad, h_pad), jnp.bfloat16),
        compiler_params=cp1,
    )(x_p, w1, dinv)

    if resident:
        y_spec = pl.BlockSpec((n_pad, h_pad), lambda i, k: (0, 0))
    else:
        y_spec = pl.BlockSpec((tk, h_pad), lambda i, k: (k, 0))

    # ---- Pass 1: H1 = A_hat @ X @ W1, plus BN partial sums ----------------
    h1, stats = pl.pallas_call(
        functools.partial(gcn1_kernel, tk=tk, resident=resident),
        grid=(num_i, num_k),
        in_specs=[
            pl.BlockSpec((tm, tk), lambda i, k: (i, k)),      # int8 counts tile
            y_spec,                                           # Y1 (resident)
            pl.BlockSpec((tm, 1), lambda i, k: (i, 0)),       # D^{-1/2} rows
        ],
        out_specs=[
            pl.BlockSpec((tm, h_pad), lambda i, k: (i, 0)),
            pl.BlockSpec((1, 2, h_pad), lambda i, k: (i, 0, 0)),
        ],
        out_shape=[
            jax.ShapeDtypeStruct((n_pad, h_pad), jnp.bfloat16),
            jax.ShapeDtypeStruct((num_i, 2, h_pad), jnp.float32),
        ],
        scratch_shapes=[pltpu.VMEM((tm, h_pad), jnp.float32)],
        compiler_params=cp2,
    )(a, y1, dinv)

    # ---- BatchNorm batch statistics (training-mode, biased variance) ------
    # Padded rows contribute 0 to the sums; divide by the real node count.
    s = jnp.sum(stats[:, 0, :], axis=0, keepdims=True)
    ss = jnp.sum(stats[:, 1, :], axis=0, keepdims=True)
    inv_n = 1.0 / float(n)
    mean = s * inv_n
    # TODO(synk): E[x^2]-E[x]^2 can cancel for very large activations; a
    # centered two-pass variance would be safer in that regime.
    var = jnp.maximum(ss * inv_n - mean * mean, 0.0)
    rstd = lax.rsqrt(var + BN_EPS)
    scale = gamma * rstd
    shift = beta - mean * scale

    # ---- BN + ReLU (+ folded D^{-1/2} column scale), applied once ---------
    y2 = pl.pallas_call(
        bn_relu_kernel,
        grid=(num_i,),
        in_specs=[
            pl.BlockSpec((tm, h_pad), lambda i: (i, 0)),
            pl.BlockSpec((1, h_pad), lambda i: (0, 0)),
            pl.BlockSpec((1, h_pad), lambda i: (0, 0)),
            pl.BlockSpec((tm, 1), lambda i: (i, 0)),
        ],
        out_specs=pl.BlockSpec((tm, h_pad), lambda i: (i, 0)),
        out_shape=jax.ShapeDtypeStruct((n_pad, h_pad), jnp.bfloat16),
        compiler_params=cp1,
    )(h1, scale, shift, dinv)

    # ---- Pass 2: OUT = A_hat @ relu(BN(H1)) @ W2 + b2 ---------------------
    out = pl.pallas_call(
        functools.partial(gcn2_kernel, tk=tk, resident=resident),
        grid=(num_i, num_k),
        in_specs=[
            pl.BlockSpec((tm, tk), lambda i, k: (i, k)),      # int8 counts tile
            y_spec,                                           # Y2 (resident)
            pl.BlockSpec((tm, 1), lambda i, k: (i, 0)),       # D^{-1/2} rows
            pl.BlockSpec((h_pad, h_pad), lambda i, k: (0, 0)),
            pl.BlockSpec((1, h_pad), lambda i, k: (0, 0)),
        ],
        out_specs=pl.BlockSpec((tm, h_pad), lambda i, k: (i, 0)),
        out_shape=jax.ShapeDtypeStruct((n_pad, h_pad), jnp.float32),
        scratch_shapes=[pltpu.VMEM((tm, h_pad), jnp.float32)],
        compiler_params=cp2,
    )(a, y2, dinv, w2, b2)

    return out[:n, :h]


def graph_encoder(x, edge_index, params):
    """Convenience wrapper (prepare_graph / prepare_params are cacheable)."""
    n, din = x.shape
    h = params["w1"].shape[1]
    g = prepare_graph(edge_index, n)
    pp = prepare_params(params, din, h)
    return _forward(x, g["a"], g["dinv"], pp["w1"], pp["w2"], pp["gamma"],
                    pp["beta"], pp["b2"], n=n, din=din, h=h)


# --------------------------------------------------------------------------
# Parameters + pure-JAX reference
# --------------------------------------------------------------------------
def init_params(key, input_dim, hidden_dim):
    k1, k2 = jax.random.split(key)

    def glorot(k, fan_in, fan_out):
        lim = jnp.sqrt(6.0 / (fan_in + fan_out))
        return jax.random.uniform(k, (fan_in, fan_out), jnp.float32, -lim, lim)

    return {
        "w1": glorot(k1, input_dim, hidden_dim),
        "b1": jnp.zeros((hidden_dim,), jnp.float32),  # cancelled by BN
        "gamma": jnp.ones((hidden_dim,), jnp.float32),
        "beta": jnp.zeros((hidden_dim,), jnp.float32),
        "w2": glorot(k2, hidden_dim, hidden_dim),
        "b2": jnp.zeros((hidden_dim,), jnp.float32),
    }


def _reference(x, edge_index, params):
    n = x.shape[0]
    src, dst = edge_index[0], edge_index[1]
    c = jnp.zeros((n, n), jnp.float32).at[dst, src].add(1.0)
    d = jnp.diagonal(c)
    idx = jnp.arange(n)
    c = c.at[idx, idx].set(jnp.where(d > 0.0, d, 1.0))
    deg = jnp.sum(c, axis=1)
    dinv = jnp.where(deg > 0.0, lax.rsqrt(deg), 0.0)
    a_hat = dinv[:, None] * c * dinv[None, :]
    h1 = a_hat @ (x @ params["w1"])
    mean = jnp.mean(h1, axis=0)
    var = jnp.var(h1, axis=0)
    hn = (h1 - mean) * lax.rsqrt(var + BN_EPS) * params["gamma"] + params["beta"]
    hn = jnp.maximum(hn, 0.0)
    return a_hat @ (hn @ params["w2"]) + params["b2"]


if __name__ == "__main__":
    N, INPUT_DIM, HIDDEN_DIM, E = 32, 16, 32, 96

    key = jax.random.PRNGKey(0)
    kx, ks, kd, kp = jax.random.split(key, 4)

    x = jax.random.normal(kx, (N, INPUT_DIM), jnp.float32)
    edge_index = jnp.stack([
        jax.random.randint(ks, (E,), 0, N, dtype=jnp.int32),
        jax.random.randint(kd, (E,), 0, N, dtype=jnp.int32),
    ], axis=0)                                           # (2, E)

    params = init_params(kp, INPUT_DIM, HIDDEN_DIM)

    out = graph_encoder(x, edge_index, params)
    out = jax.block_until_ready(out)
    assert out.shape == (N, HIDDEN_DIM) and out.dtype == jnp.float32
    assert bool(jnp.all(jnp.isfinite(out)))

    ref = _reference(x, edge_index, params)
    rel_err = float(jnp.max(jnp.abs(out - ref)) / (jnp.max(jnp.abs(ref)) + 1e-6))
    assert rel_err < 0.1, f"mismatch vs reference: rel-max-err={rel_err:.4f}"

    print("KERNEL_OK")
</pallas_src>

<mosaic_0001>
module attributes {stable_mosaic.version = 11 : i64} {
  func.func @xw1_kernel(%arg0: i32, %arg1: memref<128x128xbf16, #tpu.memory_space<vmem>>, %arg2: memref<128x128xbf16, #tpu.memory_space<vmem>>, %arg3: memref<128x1xf32, #tpu.memory_space<vmem>>, %arg4: memref<128x128xbf16, #tpu.memory_space<vmem>>) attributes {dimension_semantics = [#tpu.dimension_semantics<parallel>], iteration_bounds = array<i64: 1>, scalar_prefetch = 0 : i64, scratch_operands = 0 : i64, tpu.core_type = #tpu.core_type<tc>, window_params = [{transform_indices = @transform_0, window_bounds = array<i64: 128, 128>}, {pipeline_mode = #tpu.pipeline_mode<synchronous>, transform_indices = @transform_1, window_bounds = array<i64: 128, 128>}, {transform_indices = @transform_2, window_bounds = array<i64: 128, 1>}, {transform_indices = @transform_3, window_bounds = array<i64: 128, 128>}]} {
    %c0 = arith.constant 0 : index
    %c0_0 = arith.constant 0 : index
    %0 = vector.load %arg1[%c0, %c0_0] : memref<128x128xbf16, #tpu.memory_space<vmem>>, vector<128x128xbf16>
    %c0_1 = arith.constant 0 : index
    %c0_2 = arith.constant 0 : index
    %1 = vector.load %arg2[%c0_1, %c0_2] : memref<128x128xbf16, #tpu.memory_space<vmem>>, vector<128x128xbf16>
    %cst = arith.constant dense<0.000000e+00> : vector<128x128xf32>
    %2 = tpu.matmul %0, %1, %cst {dimension_numbers = #tpu.dot_dimension_numbers<[1], [0], [0], [1], [0, 0, 1, 1], [], []>} : vector<128x128xbf16>, vector<128x128xbf16>, vector<128x128xf32> -> vector<128x128xf32>
    %c0_3 = arith.constant 0 : index
    %c0_4 = arith.constant 0 : index
    %3 = vector.load %arg3[%c0_3, %c0_4] : memref<128x1xf32, #tpu.memory_space<vmem>>, vector<128x1xf32>
    %4 = vector.broadcast %3 : vector<128x1xf32> to vector<128x128xf32>
    %5 = arith.mulf %4, %2 : vector<128x128xf32>
    %6 = arith.truncf %5 : vector<128x128xf32> to vector<128x128xbf16>
    %c0_5 = arith.constant 0 : index
    %c0_6 = arith.constant 0 : index
    %7 = vector.load %arg4[%c0_5, %c0_6] : memref<128x128xbf16, #tpu.memory_space<vmem>>, vector<128x128xbf16>
    tpu.vector_store %arg4[%c0_5, %c0_6], %6 {strides = array<i32>} : memref<128x128xbf16, #tpu.memory_space<vmem>>, vector<128x128xbf16>,
    return
  }
  func.func @transform_0(%arg0: i32) -> (i32, i32) {
    %c0_i32 = arith.constant 0 : i32
    %c0_i32_0 = arith.constant 0 : i32
    return %arg0, %c0_i32 : i32, i32
  }
  func.func @transform_1(%arg0: i32) -> (i32, i32) {
    %c0_i32 = arith.constant 0 : i32
    %c0_i32_0 = arith.constant 0 : i32
    %c0_i32_1 = arith.constant 0 : i32
    return %c0_i32, %c0_i32_0 : i32, i32
  }
  func.func @transform_2(%arg0: i32) -> (i32, i32) {
    %c0_i32 = arith.constant 0 : i32
    %c0_i32_0 = arith.constant 0 : i32
    return %arg0, %c0_i32 : i32, i32
  }
  func.func @transform_3(%arg0: i32) -> (i32, i32) {
    %c0_i32 = arith.constant 0 : i32
    %c0_i32_0 = arith.constant 0 : i32
    return %arg0, %c0_i32 : i32, i32
  }
}

module attributes {stable_mosaic.version = 11 : i64} {
  func.func @gcn1_kernel(%arg0: i32, %arg1: i32, %arg2: memref<128x128xi8, #tpu.memory_space<vmem>>, %arg3: memref<128x128xbf16, #tpu.memory_space<vmem>>, %arg4: memref<128x1xf32, #tpu.memory_space<vmem>>, %arg5: memref<128x128xbf16, #tpu.memory_space<vmem>>, %arg6: memref<1x2x128xf32, #tpu.memory_space<vmem>>, %arg7: memref<128x128xf32, #tpu.memory_space<vmem>>) attributes {dimension_semantics = [#tpu.dimension_semantics<parallel>, #tpu.dimension_semantics<arbitrary>], iteration_bounds = array<i64: 1, 1>, scalar_prefetch = 0 : i64, scratch_operands = 1 : i64, tpu.core_type = #tpu.core_type<tc>, window_params = [{transform_indices = @transform_0, window_bounds = array<i64: 128, 128>}, {pipeline_mode = #tpu.pipeline_mode<synchronous>, transform_indices = @transform_1, window_bounds = array<i64: 128, 128>}, {transform_indices = @transform_2, window_bounds = array<i64: 128, 1>}, {transform_indices = @transform_3, window_bounds = array<i64: 128, 128>}, {transform_indices = @transform_4, window_bounds = array<i64: 1, 2, 128>}]} {
    %c0_i32 = arith.constant 0 : i32
    %0 = arith.cmpi eq, %arg1, %c0_i32 : i32
    %1 = arith.extui %0 : i1 to i32
    %c0_i32_0 = arith.constant 0 : i32
    %2 = arith.cmpi ne, %1, %c0_i32_0 : i32
    scf.if %2 {
      %cst_9 = arith.constant 0.000000e+00 : f32
      %17 = vector.broadcast %cst_9 : f32 to vector<128x128xf32>
      %c0_10 = arith.constant 0 : index
      %c0_11 = arith.constant 0 : index
      %18 = vector.load %arg7[%c0_10, %c0_11] : memref<128x128xf32, #tpu.memory_space<vmem>>, vector<128x128xf32>
      tpu.vector_store %arg7[%c0_10, %c0_11], %17 {strides = array<i32>} : memref<128x128xf32, #tpu.memory_space<vmem>>, vector<128x128xf32>,
    } else {
    }
    %c128_i32 = arith.constant 128 : i32
    %3 = arith.muli %arg1, %c128_i32 : i32
    %4 = tpu.assume_multiple %3, 128 : i32
    %5 = arith.index_cast %4 : i32 to index
    %c0 = arith.constant 0 : index
    %6 = vector.load %arg3[%5, %c0] : memref<128x128xbf16, #tpu.memory_space<vmem>>, vector<128x128xbf16>
    %c0_1 = arith.constant 0 : index
    %c0_2 = arith.constant 0 : index
    %7 = vector.load %arg2[%c0_1, %c0_2] : memref<128x128xi8, #tpu.memory_space<vmem>>, vector<128x128xi8>
    %8 = arith.sitofp %7 : vector<128x128xi8> to vector<128x128xf32>
    %9 = arith.truncf %8 : vector<128x128xf32> to vector<128x128xbf16>
    %c0_3 = arith.constant 0 : index
    %c0_4 = arith.constant 0 : index
    %10 = vector.load %arg7[%c0_3, %c0_4] : memref<128x128xf32, #tpu.memory_space<vmem>>, vector<128x128xf32>
    %cst = arith.constant dense<0.000000e+00> : vector<128x128xf32>
    %11 = tpu.matmul %9, %6, %cst {dimension_numbers = #tpu.dot_dimension_numbers<[1], [0], [0], [1], [0, 0, 1, 1], [], []>} : vector<128x128xbf16>, vector<128x128xbf16>, vector<128x128xf32> -> vector<128x128xf32>
    %12 = arith.addf %10, %11 : vector<128x128xf32>
    %c0_5 = arith.constant 0 : index
    %c0_6 = arith.constant 0 : index
    %13 = vector.load %arg7[%c0_5, %c0_6] : memref<128x128xf32, #tpu.memory_space<vmem>>, vector<128x128xf32>
    tpu.vector_store %arg7[%c0_5, %c0_6], %12 {strides = array<i32>} : memref<128x128xf32, #tpu.memory_space<vmem>>, vector<128x128xf32>,
    %c0_i32_7 = arith.constant 0 : i32
    %14 = arith.cmpi eq, %arg1, %c0_i32_7 : i32
    %15 = arith.extui %14 : i1 to i32
    %c0_i32_8 = arith.constant 0 : i32
    %16 = arith.cmpi ne, %15, %c0_i32_8 : i32
    scf.if %16 {
      %c0_9 = arith.constant 0 : index
      %c0_10 = arith.constant 0 : index
      %17 = vector.load %arg4[%c0_9, %c0_10] : memref<128x1xf32, #tpu.memory_space<vmem>>, vector<128x1xf32>
      %c0_11 = arith.constant 0 : index
      %c0_12 = arith.constant 0 : index
      %18 = vector.load %arg7[%c0_11, %c0_12] : memref<128x128xf32, #tpu.memory_space<vmem>>, vector<128x128xf32>
      %19 = vector.broadcast %17 : vector<128x1xf32> to vector<128x128xf32>
      %20 = arith.mulf %19, %18 : vector<128x128xf32>
      %cst_13 = arith.constant dense<0.000000e+00> : vector<128xf32>
      %21 = vector.multi_reduction <add>, %20, %cst_13 [0] : vector<128x128xf32> to vector<128xf32>
      %22 = vector.shape_cast %21 : vector<128xf32> to vector<1x128xf32>
      %23 = arith.mulf %20, %20 : vector<128x128xf32>
      %cst_14 = arith.constant dense<0.000000e+00> : vector<128xf32>
      %24 = vector.multi_reduction <add>, %23, %cst_14 [0] : vector<128x128xf32> to vector<128xf32>
      %25 = vector.shape_cast %24 : vector<128xf32> to vector<1x128xf32>
      %26 = tpu.concatenate %22, %25 in 0 : vector<1x128xf32>, vector<1x128xf32> -> vector<2x128xf32>
      %27 = vector.shape_cast %26 : vector<2x128xf32> to vector<1x2x128xf32>
      %c0_15 = arith.constant 0 : index
      %c0_16 = arith.constant 0 : index
      %c0_17 = arith.constant 0 : index
      %28 = vector.load %arg6[%c0_15, %c0_16, %c0_17] : memref<1x2x128xf32, #tpu.memory_space<vmem>>, vector<1x2x128xf32>
      tpu.vector_store %arg6[%c0_15, %c0_16, %c0_17], %27 {strides = array<i32>} : memref<1x2x128xf32, #tpu.memory_space<vmem>>, vector<1x2x128xf32>,
      %29 = arith.truncf %20 : vector<128x128xf32> to vector<128x128xbf16>
      %c0_18 = arith.constant 0 : index
      %c0_19 = arith.constant 0 : index
      %30 = vector.load %arg5[%c0_18, %c0_19] : memref<128x128xbf16, #tpu.memory_space<vmem>>, vector<128x128xbf16>
      tpu.vector_store %arg5[%c0_18, %c0_19], %29 {strides = array<i32>} : memref<128x128xbf16, #tpu.memory_space<vmem>>, vector<128x128xbf16>,
    } else {
    }
    return
  }
  func.func @transform_0(%arg0: i32, %arg1: i32) -> (i32, i32) {
    %c0_i32 = arith.constant 0 : i32
    return %arg0, %arg1 : i32, i32
  }
  func.func @transform_1(%arg0: i32, %arg1: i32) -> (i32, i32) {
    %c0_i32 = arith.constant 0 : i32
    %c0_i32_0 = arith.constant 0 : i32
    %c0_i32_1 = arith.constant 0 : i32
    return %c0_i32, %c0_i32_0 : i32, i32
  }
  func.func @transform_2(%arg0: i32, %arg1: i32) -> (i32, i32) {
    %c0_i32 = arith.constant 0 : i32
    %c0_i32_0 = arith.constant 0 : i32
    return %arg0, %c0_i32 : i32, i32
  }
  func.func @transform_3(%arg0: i32, %arg1: i32) -> (i32, i32) {
    %c0_i32 = arith.constant 0 : i32
    %c0_i32_0 = arith.constant 0 : i32
    return %arg0, %c0_i32 : i32, i32
  }
  func.func @transform_4(%arg0: i32, %arg1: i32) -> (i32, i32, i32) {
    %c0_i32 = arith.constant 0 : i32
    %c0_i32_0 = arith.constant 0 : i32
    %c0_i32_1 = arith.constant 0 : i32
    return %arg0, %c0_i32, %c0_i32_0 : i32, i32, i32
  }
}

module attributes {stable_mosaic.version = 11 : i64} {
  func.func @bn_relu_kernel(%arg0: i32, %arg1: memref<128x128xbf16, #tpu.memory_space<vmem>>, %arg2: memref<1x128xf32, #tpu.memory_space<vmem>>, %arg3: memref<1x128xf32, #tpu.memory_space<vmem>>, %arg4: memref<128x1xf32, #tpu.memory_space<vmem>>, %arg5: memref<128x128xbf16, #tpu.memory_space<vmem>>) attributes {dimension_semantics = [#tpu.dimension_semantics<parallel>], iteration_bounds = array<i64: 1>, scalar_prefetch = 0 : i64, scratch_operands = 0 : i64, tpu.core_type = #tpu.core_type<tc>, window_params = [{transform_indices = @transform_0, window_bounds = array<i64: 128, 128>}, {pipeline_mode = #tpu.pipeline_mode<synchronous>, transform_indices = @transform_1, window_bounds = array<i64: 1, 128>}, {pipeline_mode = #tpu.pipeline_mode<synchronous>, transform_indices = @transform_2, window_bounds = array<i64: 1, 128>}, {transform_indices = @transform_3, window_bounds = array<i64: 128, 1>}, {transform_indices = @transform_4, window_bounds = array<i64: 128, 128>}]} {
    %c0 = arith.constant 0 : index
    %c0_0 = arith.constant 0 : index
    %0 = vector.load %arg1[%c0, %c0_0] : memref<128x128xbf16, #tpu.memory_space<vmem>>, vector<128x128xbf16>
    %1 = arith.extf %0 : vector<128x128xbf16> to vector<128x128xf32>
    %c0_1 = arith.constant 0 : index
    %c0_2 = arith.constant 0 : index
    %2 = vector.load %arg2[%c0_1, %c0_2] : memref<1x128xf32, #tpu.memory_space<vmem>>, vector<1x128xf32>
    %3 = vector.broadcast %2 : vector<1x128xf32> to vector<128x128xf32>
    %4 = arith.mulf %1, %3 : vector<128x128xf32>
    %c0_3 = arith.constant 0 : index
    %c0_4 = arith.constant 0 : index
    %5 = vector.load %arg3[%c0_3, %c0_4] : memref<1x128xf32, #tpu.memory_space<vmem>>, vector<1x128xf32>
    %6 = vector.broadcast %5 : vector<1x128xf32> to vector<128x128xf32>
    %7 = arith.addf %4, %6 : vector<128x128xf32>
    %cst = arith.constant 0.000000e+00 : f32
    %8 = vector.broadcast %cst : f32 to vector<128x128xf32>
    %9 = arith.maximumf %7, %8 : vector<128x128xf32>
    %c0_5 = arith.constant 0 : index
    %c0_6 = arith.constant 0 : index
    %10 = vector.load %arg4[%c0_5, %c0_6] : memref<128x1xf32, #tpu.memory_space<vmem>>, vector<128x1xf32>
    %11 = vector.broadcast %10 : vector<128x1xf32> to vector<128x128xf32>
    %12 = arith.mulf %11, %9 : vector<128x128xf32>
    %13 = arith.truncf %12 : vector<128x128xf32> to vector<128x128xbf16>
    %c0_7 = arith.constant 0 : index
    %c0_8 = arith.constant 0 : index
    %14 = vector.load %arg5[%c0_7, %c0_8] : memref<128x128xbf16, #tpu.memory_space<vmem>>, vector<128x128xbf16>
    tpu.vector_store %arg5[%c0_7, %c0_8], %13 {strides = array<i32>} : memref<128x128xbf16, #tpu.memory_space<vmem>>, vector<128x128xbf16>,
    return
  }
  func.func @transform_0(%arg0: i32) -> (i32, i32) {
    %c0_i32 = arith.constant 0 : i32
    %c0_i32_0 = arith.constant 0 : i32
    return %arg0, %c0_i32 : i32, i32
  }
  func.func @transform_1(%arg0: i32) -> (i32, i32) {
    %c0_i32 = arith.constant 0 : i32
    %c0_i32_0 = arith.constant 0 : i32
    %c0_i32_1 = arith.constant 0 : i32
    return %c0_i32, %c0_i32_0 : i32, i32
  }
  func.func @transform_2(%arg0: i32) -> (i32, i32) {
    %c0_i32 = arith.constant 0 : i32
    %c0_i32_0 = arith.constant 0 : i32
    %c0_i32_1 = arith.constant 0 : i32
    return %c0_i32, %c0_i32_0 : i32, i32
  }
  func.func @transform_3(%arg0: i32) -> (i32, i32) {
    %c0_i32 = arith.constant 0 : i32
    %c0_i32_0 = arith.constant 0 : i32
    return %arg0, %c0_i32 : i32, i32
  }
  func.func @transform_4(%arg0: i32) -> (i32, i32) {
    %c0_i32 = arith.constant 0 : i32
    %c0_i32_0 = arith.constant 0 : i32
    return %arg0, %c0_i32 : i32, i32
  }
}

module attributes {stable_mosaic.version = 11 : i64} {
  func.func @gcn2_kernel(%arg0: i32, %arg1: i32, %arg2: memref<128x128xi8, #tpu.memory_space<vmem>>, %arg3: memref<128x128xbf16, #tpu.memory_space<vmem>>, %arg4: memref<128x1xf32, #tpu.memory_space<vmem>>, %arg5: memref<128x128xbf16, #tpu.memory_space<vmem>>, %arg6: memref<1x128xf32, #tpu.memory_space<vmem>>, %arg7: memref<128x128xf32, #tpu.memory_space<vmem>>, %arg8: memref<128x128xf32, #tpu.memory_space<vmem>>) attributes {dimension_semantics = [#tpu.dimension_semantics<parallel>, #tpu.dimension_semantics<arbitrary>], iteration_bounds = array<i64: 1, 1>, scalar_prefetch = 0 : i64, scratch_operands = 1 : i64, tpu.core_type = #tpu.core_type<tc>, window_params = [{transform_indices = @transform_0, window_bounds = array<i64: 128, 128>}, {pipeline_mode = #tpu.pipeline_mode<synchronous>, transform_indices = @transform_1, window_bounds = array<i64: 128, 128>}, {transform_indices = @transform_2, window_bounds = array<i64: 128, 1>}, {pipeline_mode = #tpu.pipeline_mode<synchronous>, transform_indices = @transform_3, window_bounds = array<i64: 128, 128>}, {pipeline_mode = #tpu.pipeline_mode<synchronous>, transform_indices = @transform_4, window_bounds = array<i64: 1, 128>}, {transform_indices = @transform_5, window_bounds = array<i64: 128, 128>}]} {
    %c0_i32 = arith.constant 0 : i32
    %0 = arith.cmpi eq, %arg1, %c0_i32 : i32
    %1 = arith.extui %0 : i1 to i32
    %c0_i32_0 = arith.constant 0 : i32
    %2 = arith.cmpi ne, %1, %c0_i32_0 : i32
    scf.if %2 {
      %cst_9 = arith.constant 0.000000e+00 : f32
      %17 = vector.broadcast %cst_9 : f32 to vector<128x128xf32>
      %c0_10 = arith.constant 0 : index
      %c0_11 = arith.constant 0 : index
      %18 = vector.load %arg8[%c0_10, %c0_11] : memref<128x128xf32, #tpu.memory_space<vmem>>, vector<128x128xf32>
      tpu.vector_store %arg8[%c0_10, %c0_11], %17 {strides = array<i32>} : memref<128x128xf32, #tpu.memory_space<vmem>>, vector<128x128xf32>,
    } else {
    }
    %c128_i32 = arith.constant 128 : i32
    %3 = arith.muli %arg1, %c128_i32 : i32
    %4 = tpu.assume_multiple %3, 128 : i32
    %5 = arith.index_cast %4 : i32 to index
    %c0 = arith.constant 0 : index
    %6 = vector.load %arg3[%5, %c0] : memref<128x128xbf16, #tpu.memory_space<vmem>>, vector<128x128xbf16>
    %c0_1 = arith.constant 0 : index
    %c0_2 = arith.constant 0 : index
    %7 = vector.load %arg2[%c0_1, %c0_2] : memref<128x128xi8, #tpu.memory_space<vmem>>, vector<128x128xi8>
    %8 = arith.sitofp %7 : vector<128x128xi8> to vector<128x128xf32>
    %9 = arith.truncf %8 : vector<128x128xf32> to vector<128x128xbf16>
    %c0_3 = arith.constant 0 : index
    %c0_4 = arith.constant 0 : index
    %10 = vector.load %arg8[%c0_3, %c0_4] : memref<128x128xf32, #tpu.memory_space<vmem>>, vector<128x128xf32>
    %cst = arith.constant dense<0.000000e+00> : vector<128x128xf32>
    %11 = tpu.matmul %9, %6, %cst {dimension_numbers = #tpu.dot_dimension_numbers<[1], [0], [0], [1], [0, 0, 1, 1], [], []>} : vector<128x128xbf16>, vector<128x128xbf16>, vector<128x128xf32> -> vector<128x128xf32>
    %12 = arith.addf %10, %11 : vector<128x128xf32>
    %c0_5 = arith.constant 0 : index
    %c0_6 = arith.constant 0 : index
    %13 = vector.load %arg8[%c0_5, %c0_6] : memref<128x128xf32, #tpu.memory_space<vmem>>, vector<128x128xf32>
    tpu.vector_store %arg8[%c0_5, %c0_6], %12 {strides = array<i32>} : memref<128x128xf32, #tpu.memory_space<vmem>>, vector<128x128xf32>,
    %c0_i32_7 = arith.constant 0 : i32
    %14 = arith.cmpi eq, %arg1, %c0_i32_7 : i32
    %15 = arith.extui %14 : i1 to i32
    %c0_i32_8 = arith.constant 0 : i32
    %16 = arith.cmpi ne, %15, %c0_i32_8 : i32
    scf.if %16 {
      %c0_9 = arith.constant 0 : index
      %c0_10 = arith.constant 0 : index
      %17 = vector.load %arg4[%c0_9, %c0_10] : memref<128x1xf32, #tpu.memory_space<vmem>>, vector<128x1xf32>
      %c0_11 = arith.constant 0 : index
      %c0_12 = arith.constant 0 : index
      %18 = vector.load %arg8[%c0_11, %c0_12] : memref<128x128xf32, #tpu.memory_space<vmem>>, vector<128x128xf32>
      %19 = vector.broadcast %17 : vector<128x1xf32> to vector<128x128xf32>
      %20 = arith.mulf %19, %18 : vector<128x128xf32>
      %21 = arith.truncf %20 : vector<128x128xf32> to vector<128x128xbf16>
      %c0_13 = arith.constant 0 : index
      %c0_14 = arith.constant 0 : index
      %22 = vector.load %arg5[%c0_13, %c0_14] : memref<128x128xbf16, #tpu.memory_space<vmem>>, vector<128x128xbf16>
      %cst_15 = arith.constant dense<0.000000e+00> : vector<128x128xf32>
      %23 = tpu.matmul %21, %22, %cst_15 {dimension_numbers = #tpu.dot_dimension_numbers<[1], [0], [0], [1], [0, 0, 1, 1], [], []>} : vector<128x128xbf16>, vector<128x128xbf16>, vector<128x128xf32> -> vector<128x128xf32>
      %c0_16 = arith.constant 0 : index
      %c0_17 = arith.constant 0 : index
      %24 = vector.load %arg6[%c0_16, %c0_17] : memref<1x128xf32, #tpu.memory_space<vmem>>, vector<1x128xf32>
      %25 = vector.broadcast %24 : vector<1x128xf32> to vector<128x128xf32>
      %26 = arith.addf %23, %25 : vector<128x128xf32>
      %c0_18 = arith.constant 0 : index
      %c0_19 = arith.constant 0 : index
      %27 = vector.load %arg7[%c0_18, %c0_19] : memref<128x128xf32, #tpu.memory_space<vmem>>, vector<128x128xf32>
      tpu.vector_store %arg7[%c0_18, %c0_19], %26 {strides = array<i32>} : memref<128x128xf32, #tpu.memory_space<vmem>>, vector<128x128xf32>,
    } else {
    }
    return
  }
  func.func @transform_0(%arg0: i32, %arg1: i32) -> (i32, i32) {
    %c0_i32 = arith.constant 0 : i32
    return %arg0, %arg1 : i32, i32
  }
  func.func @transform_1(%arg0: i32, %arg1: i32) -> (i32, i32) {
    %c0_i32 = arith.constant 0 : i32
    %c0_i32_0 = arith.constant 0 : i32
    %c0_i32_1 = arith.constant 0 : i32
    return %c0_i32, %c0_i32_0 : i32, i32
  }
  func.func @transform_2(%arg0: i32, %arg1: i32) -> (i32, i32) {
    %c0_i32 = arith.constant 0 : i32
    %c0_i32_0 = arith.constant 0 : i32
    return %arg0, %c0_i32 : i32, i32
  }
  func.func @transform_3(%arg0: i32, %arg1: i32) -> (i32, i32) {
    %c0_i32 = arith.constant 0 : i32
    %c0_i32_0 = arith.constant 0 : i32
    %c0_i32_1 = arith.constant 0 : i32
    return %c0_i32, %c0_i32_0 : i32, i32
  }
  func.func @transform_4(%arg0: i32, %arg1: i32) -> (i32, i32) {
    %c0_i32 = arith.constant 0 : i32
    %c0_i32_0 = arith.constant 0 : i32
    %c0_i32_1 = arith.constant 0 : i32
    return %c0_i32, %c0_i32_0 : i32, i32
  }
  func.func @transform_5(%arg0: i32, %arg1: i32) -> (i32, i32) {
    %c0_i32 = arith.constant 0 : i32
    %c0_i32_0 = arith.constant 0 : i32
    return %arg0, %c0_i32 : i32, i32
  }
}

</mosaic_0001>

<llo_original>
// kernel: _forward.6
$region0: #{_forward.6}
  #allocation0 [shape = 'u32[]', space=smem, size = 0x4, offset = 0x4, fixed_abs, tag = 'smem constant byte address 0x4 - core index']
  #allocation1 [shape = 'u32[144,128]{1,0:T(1,128)}', space=vmem, size = 0x12000, scoped, tag = 'internal scratch']
  %s0 = inlined_call_operand.hbm [shape: bf16[128,128], index: 0, kind: input, shape index: {}]
  %s1 = inlined_call_operand.hbm [shape: f32[1,128], index: 1, kind: input, shape index: {}]
  %s2 = inlined_call_operand.hbm [shape: f32[1,128], index: 2, kind: input, shape index: {}]
  %s3 = inlined_call_operand.hbm [shape: f32[128,1], index: 3, kind: input, shape index: {}]
  %s4 = inlined_call_operand.hbm [shape: bf16[128,128], index: 4, kind: output, shape index: {}]
  %s5 = sld [smem:[#allocation0]]
  $region42: #{_forward.6} parent=0
    _
  %s7 = ssub.s32 1, %s5
  %s8 = scalar_select 0, %s7, %s5
  $region1: #{_forward.6} parent=0
    #allocation2 [shape = 'u8[32768]{0}', space=vmem, size = 0x8000, scoped, tag = 'input window, operand 0, single buffered']
    #allocation3 [shape = 's32[1]{0}', space=sflag, size = 0x4, scoped, tag = 'scoped memory for _forward.6']
    #allocation4 [shape = 's32[1]{0}', space=sflag, size = 0x4, scoped, tag = 'scoped memory for _forward.6']
    #allocation5 [shape = 'u8[512]{0}', space=vmem, size = 0x400, scoped, tag = 'input window, operand 1, single buffered']
    #allocation6 [shape = 's32[1]{0}', space=sflag, size = 0x4, scoped, tag = 'scoped memory for _forward.6']
    #allocation7 [shape = 'u8[512]{0}', space=vmem, size = 0x400, scoped, tag = 'input window, operand 2, single buffered']
    #allocation8 [shape = 'u8[65536]{0}', space=vmem, size = 0x10000, scoped, tag = 'input window, operand 3, single buffered']
    #allocation9 [shape = 's32[1]{0}', space=sflag, size = 0x4, scoped, tag = 'scoped memory for _forward.6']
    #allocation10 [shape = 'u8[32768]{0}', space=vmem, size = 0x8000, scoped, tag = 'output window, operand 0, single buffered']
    %9 = vsyncpa [#allocation3], 0
    %10 = vsyncpa [#allocation6], 0
    %11 = vsyncpa [#allocation9], 0
    %12 = vsyncpa [#allocation4], 0
    // Predicated region
    $region2: #{_forward.6} parent=1 // pred_check
      _
    $region3: #{_forward.6} parent=1 // pred_check_branch
      %14 = sbr.rel (0) target = $region5
    $region4: #{_forward.6} parent=1 // pred_region
      %s16 = ssub.s32 1024, 1024
      %17 = vsyncadd [#allocation3], %s16
      %s18 = sshll.u32 [#allocation2], 4
      %s19 = int_to_ptr.vmem [resolvable:$true] %s18
      %24 = dma.hbm_to_vmem [thread:$0]  %s0, 1024, %s19, [#allocation3], 64, 64, 4
    $region5: #{_forward.6} parent=1 // pred_fallthru
      _
    // Predicated region
    $region6: #{_forward.6} parent=1 // pred_check
      _
    $region7: #{_forward.6} parent=1 // pred_check_branch
      %26 = sbr.rel (0) target = $region9
    $region8: #{_forward.6} parent=1 // pred_region
      %s28 = ssub.s32 16, 16
      %29 = vsyncadd [#allocation6], %s28
      %s31 = sshll.u32 [#allocation5], 4
      %s32 = int_to_ptr.vmem [resolvable:$true] %s31
      %34 = dma.hbm_to_vmem [thread:$0]  %s1, 16, %s32, [#allocation6]
    $region9: #{_forward.6} parent=1 // pred_fallthru
      _
    // Predicated region
    $region10: #{_forward.6} parent=1 // pred_check
      _
    $region11: #{_forward.6} parent=1 // pred_check_branch
      %36 = sbr.rel (0) target = $region13
    $region12: #{_forward.6} parent=1 // pred_region
      %s38 = ssub.s32 16, 16
      %39 = vsyncadd [#allocation6], %s38
      %s41 = sshll.u32 [#allocation7], 4
      %s42 = int_to_ptr.vmem [resolvable:$true] %s41
      %44 = dma.hbm_to_vmem [thread:$0]  %s2, 16, %s42, [#allocation6]
    $region13: #{_forward.6} parent=1 // pred_fallthru
      _
    // Predicated region
    $region14: #{_forward.6} parent=1 // pred_check
      _
    $region15: #{_forward.6} parent=1 // pred_check_branch
      %46 = sbr.rel (0) target = $region17
    $region16: #{_forward.6} parent=1 // pred_region
      %s48 = ssub.s32 2048, 2048
      %49 = vsyncadd [#allocation9], %s48
      %s50 = sshll.u32 [#allocation8], 4
      %s51 = int_to_ptr.vmem [resolvable:$true] %s50
      %56 = dma.hbm_to_vmem [thread:$0]  %s3, 2048, %s51, [#allocation9], 128, 128, 8
    $region17: #{_forward.6} parent=1 // pred_fallthru
      _
    // Predicated region
    $region18: #{_forward.6} parent=1 // pred_check
      _
    $region19: #{_forward.6} parent=1 // pred_check_branch
      %58 = sbr.rel (0) target = $region21
    $region20: #{_forward.6} parent=1 // pred_region
      %59 = dma.done [#allocation3], 1024
    $region21: #{_forward.6} parent=1 // pred_fallthru
      _
    // Predicated region
    $region22: #{_forward.6} parent=1 // pred_check
      _
    $region23: #{_forward.6} parent=1 // pred_check_branch
      %61 = sbr.rel (0) target = $region25
    $region24: #{_forward.6} parent=1 // pred_region
      %62 = dma.done [#allocation6], 16
    $region25: #{_forward.6} parent=1 // pred_fallthru
      _
    // Predicated region
    $region26: #{_forward.6} parent=1 // pred_check
      _
    $region27: #{_forward.6} parent=1 // pred_check_branch
      %64 = sbr.rel (0) target = $region29
    $region28: #{_forward.6} parent=1 // pred_region
      %65 = dma.done [#allocation6], 16
    $region29: #{_forward.6} parent=1 // pred_fallthru
      _
    // Predicated region
    $region30: #{_forward.6} parent=1 // pred_check
      _
    $region31: #{_forward.6} parent=1 // pred_check_branch
      %67 = sbr.rel (0) target = $region33
    $region32: #{_forward.6} parent=1 // pred_region
      %68 = dma.done [#allocation9], 2048
    $region33: #{_forward.6} parent=1 // pred_fallthru
      _
    %v69 = vld [vmem:[#allocation2] sm:$0xf]
    %v70 = vld [vmem:[#allocation2 + $0x4] sm:$0xf]
    %v71 = vld [vmem:[#allocation2 + $0x8] sm:$0xf]
    %v72 = vld [vmem:[#allocation2 + $0xc] sm:$0xf]
    %v73 = vld [vmem:[#allocation2 + $0x10] sm:$0xf]
    %v74 = vld [vmem:[#allocation2 + $0x14] sm:$0xf]
    %v75 = vld [vmem:[#allocation2 + $0x18] sm:$0xf]
    %v76 = vld [vmem:[#allocation2 + $0x1c] sm:$0xf]
    %v77 = vld [vmem:[#allocation2 + $0x20] sm:$0xf]
    %v78 = vld [vmem:[#allocation2 + $0x24] sm:$0xf]
    %v79 = vld [vmem:[#allocation2 + $0x28] sm:$0xf]
    %v80 = vld [vmem:[#allocation2 + $0x2c] sm:$0xf]
    %v81 = vld [vmem:[#allocation2 + $0x30] sm:$0xf]
    %v82 = vld [vmem:[#allocation2 + $0x34] sm:$0xf]
    %v83 = vld [vmem:[#allocation2 + $0x38] sm:$0xf]
    %v84 = vld [vmem:[#allocation2 + $0x3c] sm:$0xf]
    %v85 = vunpack.c.l.bf16 %v69
    %v86 = vunpack.c.l.bf16 %v70
    %v87 = vunpack.c.l.bf16 %v71
    %v88 = vunpack.c.l.bf16 %v72
    %v89 = vunpack.c.l.bf16 %v73
    %v90 = vunpack.c.l.bf16 %v74
    %v91 = vunpack.c.l.bf16 %v75
    %v92 = vunpack.c.l.bf16 %v76
    %v93 = vunpack.c.l.bf16 %v77
    %v94 = vunpack.c.l.bf16 %v78
    %v95 = vunpack.c.l.bf16 %v79
    %v96 = vunpack.c.l.bf16 %v80
    %v97 = vunpack.c.l.bf16 %v81
    %v98 = vunpack.c.l.bf16 %v82
    %v99 = vunpack.c.l.bf16 %v83
    %v100 = vunpack.c.l.bf16 %v84
    %v101 = vld [vmem:[#allocation5] sm:$0x1]
    %v103 = vlaneseq
    %v104 = vshrl.u32 %v103, 7
    %v105 = vsub.s32 0, %v104
    %v106 = vrot.slane %v101, %v105
    %v108 = vmul.f32 %v85, %v106
    %v109 = vmul.f32 %v86, %v106
    %v110 = vmul.f32 %v87, %v106
    %v111 = vmul.f32 %v88, %v106
    %v112 = vmul.f32 %v89, %v106
    %v113 = vmul.f32 %v90, %v106
    %v114 = vmul.f32 %v91, %v106
    %v115 = vmul.f32 %v92, %v106
    %v116 = vmul.f32 %v93, %v106
    %v117 = vmul.f32 %v94, %v106
    %v118 = vmul.f32 %v95, %v106
    %v119 = vmul.f32 %v96, %v106
    %v120 = vmul.f32 %v97, %v106
    %v121 = vmul.f32 %v98, %v106
    %v122 = vmul.f32 %v99, %v106
    %v123 = vmul.f32 %v100, %v106
    %v124 = vld [vmem:[#allocation7] sm:$0x1]
    %v126 = vlaneseq
    %v127 = vshrl.u32 %v126, 7
    %v128 = vsub.s32 0, %v127
    %v129 = vrot.slane %v124, %v128
    %v131 = vadd.f32 %v108, %v129
    %v132 = vadd.f32 %v109, %v129
    %v133 = vadd.f32 %v110, %v129
    %v134 = vadd.f32 %v111, %v129
    %v135 = vadd.f32 %v112, %v129
    %v136 = vadd.f32 %v113, %v129
    %v137 = vadd.f32 %v114, %v129
    %v138 = vadd.f32 %v115, %v129
    %v139 = vadd.f32 %v116, %v129
    %v140 = vadd.f32 %v117, %v129
    %v141 = vadd.f32 %v118, %v129
    %v142 = vadd.f32 %v119, %v129
    %v143 = vadd.f32 %v120, %v129
    %v144 = vadd.f32 %v121, %v129
    %v145 = vadd.f32 %v122, %v129
    %v146 = vadd.f32 %v123, %v129
    %v147 = vmax.f32 %v131, 0.0
    %v148 = vmax.f32 %v132, 0.0
    %v149 = vmax.f32 %v133, 0.0
    %v150 = vmax.f32 %v134, 0.0
    %v151 = vmax.f32 %v135, 0.0
    %v152 = vmax.f32 %v136, 0.0
    %v153 = vmax.f32 %v137, 0.0
    %v154 = vmax.f32 %v138, 0.0
    %v155 = vmax.f32 %v139, 0.0
    %v156 = vmax.f32 %v140, 0.0
    %v157 = vmax.f32 %v141, 0.0
    %v158 = vmax.f32 %v142, 0.0
    %v159 = vmax.f32 %v143, 0.0
    %v160 = vmax.f32 %v144, 0.0
    %v161 = vmax.f32 %v145, 0.0
    %v162 = vmax.f32 %v146, 0.0
    %v163 = vld [vmem:[#allocation8] sm:$0xff]
    %v164 = vld [vmem:[#allocation8 + $0x8] sm:$0xff]
    %v165 = vld [vmem:[#allocation8 + $0x10] sm:$0xff]
    %v166 = vld [vmem:[#allocation8 + $0x18] sm:$0xff]
    %v167 = vld [vmem:[#allocation8 + $0x20] sm:$0xff]
    %v168 = vld [vmem:[#allocation8 + $0x28] sm:$0xff]
    %v169 = vld [vmem:[#allocation8 + $0x30] sm:$0xff]
    %v170 = vld [vmem:[#allocation8 + $0x38] sm:$0xff]
    %v171 = vld [vmem:[#allocation8 + $0x40] sm:$0xff]
    %v172 = vld [vmem:[#allocation8 + $0x48] sm:$0xff]
    %v173 = vld [vmem:[#allocation8 + $0x50] sm:$0xff]
    %v174 = vld [vmem:[#allocation8 + $0x58] sm:$0xff]
    %v175 = vld [vmem:[#allocation8 + $0x60] sm:$0xff]
    %v176 = vld [vmem:[#allocation8 + $0x68] sm:$0xff]
    %v177 = vld [vmem:[#allocation8 + $0x70] sm:$0xff]
    %v178 = vld [vmem:[#allocation8 + $0x78] sm:$0xff]
    %180 = vset.pattern.permute.xlu0 0
    %181 = vperm.xlu0 %180, %v163
    %v182 = vpop.permute.xlu0 %181
    %185 = vset.pattern.permute.xlu0 0
    %186 = vperm.xlu0 %185, %v164
    %v187 = vpop.permute.xlu0 %186
    %190 = vset.pattern.permute.xlu0 0
    %191 = vperm.xlu0 %190, %v165
    %v192 = vpop.permute.xlu0 %191
    %195 = vset.pattern.permute.xlu0 0
    %196 = vperm.xlu0 %195, %v166
    %v197 = vpop.permute.xlu0 %196
    %200 = vset.pattern.permute.xlu0 0
    %201 = vperm.xlu0 %200, %v167
    %v202 = vpop.permute.xlu0 %201
    %205 = vset.pattern.permute.xlu0 0
    %206 = vperm.xlu0 %205, %v168
    %v207 = vpop.permute.xlu0 %206
    %210 = vset.pattern.permute.xlu0 0
    %211 = vperm.xlu0 %210, %v169
    %v212 = vpop.permute.xlu0 %211
    %215 = vset.pattern.permute.xlu0 0
    %216 = vperm.xlu0 %215, %v170
    %v217 = vpop.permute.xlu0 %216
    %220 = vset.pattern.permute.xlu0 0
    %221 = vperm.xlu0 %220, %v171
    %v222 = vpop.permute.xlu0 %221
    %225 = vset.pattern.permute.xlu0 0
    %226 = vperm.xlu0 %225, %v172
    %v227 = vpop.permute.xlu0 %226
    %230 = vset.pattern.permute.xlu0 0
    %231 = vperm.xlu0 %230, %v173
    %v232 = vpop.permute.xlu0 %231
    %235 = vset.pattern.permute.xlu0 0
    %236 = vperm.xlu0 %235, %v174
    %v237 = vpop.permute.xlu0 %236
    %240 = vset.pattern.permute.xlu0 0
    %241 = vperm.xlu0 %240, %v175
    %v242 = vpop.permute.xlu0 %241
    %245 = vset.pattern.permute.xlu0 0
    %246 = vperm.xlu0 %245, %v176
    %v247 = vpop.permute.xlu0 %246
    %250 = vset.pattern.permute.xlu0 0
    %251 = vperm.xlu0 %250, %v177
    %v252 = vpop.permute.xlu0 %251
    %255 = vset.pattern.permute.xlu0 0
    %256 = vperm.xlu0 %255, %v178
    %v257 = vpop.permute.xlu0 %256
    %v259 = vmul.f32 %v182, %v147
    %v260 = vmul.f32 %v187, %v148
    %v261 = vmul.f32 %v192, %v149
    %v262 = vmul.f32 %v197, %v150
    %v263 = vmul.f32 %v202, %v151
    %v264 = vmul.f32 %v207, %v152
    %v265 = vmul.f32 %v212, %v153
    %v266 = vmul.f32 %v217, %v154
    %v267 = vmul.f32 %v222, %v155
    %v268 = vmul.f32 %v227, %v156
    %v269 = vmul.f32 %v232, %v157
    %v270 = vmul.f32 %v237, %v158
    %v271 = vmul.f32 %v242, %v159
    %v272 = vmul.f32 %v247, %v160
    %v273 = vmul.f32 %v252, %v161
    %v274 = vmul.f32 %v257, %v162
    %v275 = vpack.c.bf16 %v260, %v259
    %v276 = vpack.c.bf16 %v262, %v261
    %v277 = vpack.c.bf16 %v264, %v263
    %v278 = vpack.c.bf16 %v266, %v265
    %v279 = vpack.c.bf16 %v268, %v267
    %v280 = vpack.c.bf16 %v270, %v269
    %v281 = vpack.c.bf16 %v272, %v271
    %v282 = vpack.c.bf16 %v274, %v273
    %v291 = vunpack.c.l.b16 %v275
    %v292 = vunpack.c.h.b16 %v275
    %v293 = vunpack.c.l.b16 %v276
    %v294 = vunpack.c.h.b16 %v276
    %v295 = vunpack.c.l.b16 %v277
    %v296 = vunpack.c.h.b16 %v277
    %v297 = vunpack.c.l.b16 %v278
    %v298 = vunpack.c.h.b16 %v278
    %v299 = vunpack.c.l.b16 %v279
    %v300 = vunpack.c.h.b16 %v279
    %v301 = vunpack.c.l.b16 %v280
    %v302 = vunpack.c.h.b16 %v280
    %v303 = vunpack.c.l.b16 %v281
    %v304 = vunpack.c.h.b16 %v281
    %v305 = vunpack.c.l.b16 %v282
    %v306 = vunpack.c.h.b16 %v282
    %v307 = vpack.c.b16 %v291, %v291
    %v308 = vpack.c.b16 %v292, %v292
    %v309 = vpack.c.b16 %v293, %v293
    %v310 = vpack.c.b16 %v294, %v294
    %v311 = vpack.c.b16 %v295, %v295
    %v312 = vpack.c.b16 %v296, %v296
    %v313 = vpack.c.b16 %v297, %v297
    %v314 = vpack.c.b16 %v298, %v298
    %v315 = vpack.c.b16 %v299, %v299
    %v316 = vpack.c.b16 %v300, %v300
    %v317 = vpack.c.b16 %v301, %v301
    %v318 = vpack.c.b16 %v302, %v302
    %v319 = vpack.c.b16 %v303, %v303
    %v320 = vpack.c.b16 %v304, %v304
    %v321 = vpack.c.b16 %v305, %v305
    %v322 = vpack.c.b16 %v306, %v306
    %339 = vst [vmem:[#allocation10] sm:$0xf] %v307
    %340 = vst [vmem:[#allocation10 + $0x4] sm:$0xf] %v308
    %341 = vst [vmem:[#allocation10 + $0x8] sm:$0xf] %v309
    %342 = vst [vmem:[#allocation10 + $0xc] sm:$0xf] %v310
    %343 = vst [vmem:[#allocation10 + $0x10] sm:$0xf] %v311
    %344 = vst [vmem:[#allocation10 + $0x14] sm:$0xf] %v312
    %345 = vst [vmem:[#allocation10 + $0x18] sm:$0xf] %v313
    %346 = vst [vmem:[#allocation10 + $0x1c] sm:$0xf] %v314
    %347 = vst [vmem:[#allocation10 + $0x20] sm:$0xf] %v315
    %348 = vst [vmem:[#allocation10 + $0x24] sm:$0xf] %v316
    %349 = vst [vmem:[#allocation10 + $0x28] sm:$0xf] %v317
    %350 = vst [vmem:[#allocation10 + $0x2c] sm:$0xf] %v318
    %351 = vst [vmem:[#allocation10 + $0x30] sm:$0xf] %v319
    %352 = vst [vmem:[#allocation10 + $0x34] sm:$0xf] %v320
    %353 = vst [vmem:[#allocation10 + $0x38] sm:$0xf] %v321
    %354 = vst [vmem:[#allocation10 + $0x3c] sm:$0xf] %v322
    // Predicated region
    $region34: #{_forward.6} parent=1 // pred_check
      _
    $region35: #{_forward.6} parent=1 // pred_check_branch
      %356 = sbr.rel (0) target = $region37
    $region36: #{_forward.6} parent=1 // pred_region
      %s358 = ssub.s32 1024, 1024
      %359 = vsyncadd [#allocation4], %s358
      %s360 = sshll.u32 [#allocation10], 4
      %s361 = int_to_ptr.vmem [resolvable:$true] %s360
      %366 = dma.vmem_to_hbm [thread:$0]  %s361, 1024, %s4, [#allocation4], 64, 64, 4
    $region37: #{_forward.6} parent=1 // pred_fallthru
      _
    // Predicated region
    $region38: #{_forward.6} parent=1 // pred_check
      _
    $region39: #{_forward.6} parent=1 // pred_check_branch
      %368 = sbr.rel (0) target = $region41
    $region40: #{_forward.6} parent=1 // pred_region
      %369 = dma.done [#allocation4], 1024
    $region41: #{_forward.6} parent=1 // pred_fallthru
      _
    %370 = vsyncpa [#allocation3], 1
    %371 = vsyncpa [#allocation6], 1
    %372 = vsyncpa [#allocation9], 1
    %373 = vsyncpa [#allocation4], 1

// kernel: _forward.4
$region0: #{_forward.4}
  #allocation0 [shape = 'u32[]', space=smem, size = 0x4, offset = 0x4, fixed_abs, tag = 'smem constant byte address 0x4 - core index']
  #allocation1 [shape = 'u32[144,128]{1,0:T(1,128)}', space=vmem, size = 0x12000, scoped, tag = 'internal scratch']
  %s0 = inlined_call_operand.hbm [shape: bf16[128,128], index: 0, kind: input, shape index: {}]
  %s1 = inlined_call_operand.hbm [shape: bf16[128,128], index: 1, kind: input, shape index: {}]
  %s2 = inlined_call_operand.hbm [shape: f32[128,1], index: 2, kind: input, shape index: {}]
  %s3 = inlined_call_operand.hbm [shape: bf16[128,128], index: 3, kind: output, shape index: {}]
  %s4 = sld [smem:[#allocation0]]
  $region34: #{_forward.4} parent=0
    _
  %s6 = ssub.s32 1, %s4
  %s7 = scalar_select 0, %s6, %s4
  $region1: #{_forward.4} parent=0
    #allocation2 [shape = 'u8[32768]{0}', space=vmem, size = 0x8000, scoped, tag = 'input window, operand 0, single buffered']
    #allocation3 [shape = 's32[1]{0}', space=sflag, size = 0x4, scoped, tag = 'scoped memory for _forward.4']
    #allocation4 [shape = 's32[1]{0}', space=sflag, size = 0x4, scoped, tag = 'scoped memory for _forward.4']
    #allocation5 [shape = 'u8[32768]{0}', space=vmem, size = 0x8000, scoped, tag = 'input window, operand 1, single buffered']
    #allocation6 [shape = 's32[1]{0}', space=sflag, size = 0x4, scoped, tag = 'scoped memory for _forward.4']
    #allocation7 [shape = 'u8[65536]{0}', space=vmem, size = 0x10000, scoped, tag = 'input window, operand 2, single buffered']
    #allocation8 [shape = 'u8[32768]{0}', space=vmem, size = 0x8000, scoped, tag = 'output window, operand 0, single buffered']
    %8 = vsyncpa [#allocation3], 0
    %9 = vsyncpa [#allocation6], 0
    %10 = vsyncpa [#allocation4], 0
    // Predicated region
    $region2: #{_forward.4} parent=1 // pred_check
      _
    $region3: #{_forward.4} parent=1 // pred_check_branch
      %12 = sbr.rel (0) target = $region5
    $region4: #{_forward.4} parent=1 // pred_region
      %s14 = ssub.s32 1024, 1024
      %15 = vsyncadd [#allocation3], %s14
      %s16 = sshll.u32 [#allocation2], 4
      %s17 = int_to_ptr.vmem [resolvable:$true] %s16
      %22 = dma.hbm_to_vmem [thread:$0]  %s0, 1024, %s17, [#allocation3], 64, 64, 4
    $region5: #{_forward.4} parent=1 // pred_fallthru
      _
    // Predicated region
    $region6: #{_forward.4} parent=1 // pred_check
      _
    $region7: #{_forward.4} parent=1 // pred_check_branch
      %24 = sbr.rel (0) target = $region9
    $region8: #{_forward.4} parent=1 // pred_region
      %s26 = ssub.s32 1024, 1024
      %27 = vsyncadd [#allocation6], %s26
      %s28 = sshll.u32 [#allocation5], 4
      %s29 = int_to_ptr.vmem [resolvable:$true] %s28
      %34 = dma.hbm_to_vmem [thread:$0]  %s1, 1024, %s29, [#allocation6], 64, 64, 4
    $region9: #{_forward.4} parent=1 // pred_fallthru
      _
    // Predicated region
    $region10: #{_forward.4} parent=1 // pred_check
      _
    $region11: #{_forward.4} parent=1 // pred_check_branch
      %36 = sbr.rel (0) target = $region13
    $region12: #{_forward.4} parent=1 // pred_region
      %s38 = ssub.s32 2048, 2048
      %39 = vsyncadd [#allocation6], %s38
      %s40 = sshll.u32 [#allocation7], 4
      %s41 = int_to_ptr.vmem [resolvable:$true] %s40
      %46 = dma.hbm_to_vmem [thread:$0]  %s2, 2048, %s41, [#allocation6], 128, 128, 8
    $region13: #{_forward.4} parent=1 // pred_fallthru
      _
    // Predicated region
    $region14: #{_forward.4} parent=1 // pred_check
      _
    $region15: #{_forward.4} parent=1 // pred_check_branch
      %48 = sbr.rel (0) target = $region17
    $region16: #{_forward.4} parent=1 // pred_region
      %49 = dma.done [#allocation3], 1024
    $region17: #{_forward.4} parent=1 // pred_fallthru
      _
    // Predicated region
    $region18: #{_forward.4} parent=1 // pred_check
      _
    $region19: #{_forward.4} parent=1 // pred_check_branch
      %51 = sbr.rel (0) target = $region21
    $region20: #{_forward.4} parent=1 // pred_region
      %52 = dma.done [#allocation6], 1024
    $region21: #{_forward.4} parent=1 // pred_fallthru
      _
    // Predicated region
    $region22: #{_forward.4} parent=1 // pred_check
      _
    $region23: #{_forward.4} parent=1 // pred_check_branch
      %54 = sbr.rel (0) target = $region25
    $region24: #{_forward.4} parent=1 // pred_region
      %55 = dma.done [#allocation6], 2048
    $region25: #{_forward.4} parent=1 // pred_fallthru
      _
    %v57 = vld [vmem:[#allocation2] sm:$0xf]
    %v58 = vld [vmem:[#allocation2 + $0x4] sm:$0xf]
    %v59 = vld [vmem:[#allocation2 + $0x8] sm:$0xf]
    %v60 = vld [vmem:[#allocation2 + $0xc] sm:$0xf]
    %v61 = vld [vmem:[#allocation2 + $0x10] sm:$0xf]
    %v62 = vld [vmem:[#allocation2 + $0x14] sm:$0xf]
    %v63 = vld [vmem:[#allocation2 + $0x18] sm:$0xf]
    %v64 = vld [vmem:[#allocation2 + $0x1c] sm:$0xf]
    %v65 = vld [vmem:[#allocation2 + $0x20] sm:$0xf]
    %v66 = vld [vmem:[#allocation2 + $0x24] sm:$0xf]
    %v67 = vld [vmem:[#allocation2 + $0x28] sm:$0xf]
    %v68 = vld [vmem:[#allocation2 + $0x2c] sm:$0xf]
    %v69 = vld [vmem:[#allocation2 + $0x30] sm:$0xf]
    %v70 = vld [vmem:[#allocation2 + $0x34] sm:$0xf]
    %v71 = vld [vmem:[#allocation2 + $0x38] sm:$0xf]
    %v72 = vld [vmem:[#allocation2 + $0x3c] sm:$0xf]
    %v73 = vld [vmem:[#allocation5] sm:$0xf]
    %v74 = vld [vmem:[#allocation5 + $0x4] sm:$0xf]
    %v75 = vld [vmem:[#allocation5 + $0x8] sm:$0xf]
    %v76 = vld [vmem:[#allocation5 + $0xc] sm:$0xf]
    %v77 = vld [vmem:[#allocation5 + $0x10] sm:$0xf]
    %v78 = vld [vmem:[#allocation5 + $0x14] sm:$0xf]
    %v79 = vld [vmem:[#allocation5 + $0x18] sm:$0xf]
    %v80 = vld [vmem:[#allocation5 + $0x1c] sm:$0xf]
    %v81 = vld [vmem:[#allocation5 + $0x20] sm:$0xf]
    %v82 = vld [vmem:[#allocation5 + $0x24] sm:$0xf]
    %v83 = vld [vmem:[#allocation5 + $0x28] sm:$0xf]
    %v84 = vld [vmem:[#allocation5 + $0x2c] sm:$0xf]
    %v85 = vld [vmem:[#allocation5 + $0x30] sm:$0xf]
    %v86 = vld [vmem:[#allocation5 + $0x34] sm:$0xf]
    %v87 = vld [vmem:[#allocation5 + $0x38] sm:$0xf]
    %v88 = vld [vmem:[#allocation5 + $0x3c] sm:$0xf]
    %v105 = vunpack.c.l.b16 %v57
    %v106 = vunpack.c.l.b16 %v58
    %v107 = vunpack.c.l.b16 %v59
    %v108 = vunpack.c.l.b16 %v60
    %v109 = vunpack.c.l.b16 %v61
    %v110 = vunpack.c.l.b16 %v62
    %v111 = vunpack.c.l.b16 %v63
    %v112 = vunpack.c.l.b16 %v64
    %v113 = vunpack.c.l.b16 %v65
    %v114 = vunpack.c.l.b16 %v66
    %v115 = vunpack.c.l.b16 %v67
    %v116 = vunpack.c.l.b16 %v68
    %v117 = vunpack.c.l.b16 %v69
    %v118 = vunpack.c.l.b16 %v70
    %v119 = vunpack.c.l.b16 %v71
    %v120 = vunpack.c.l.b16 %v72
    %v121 = vpack.c.b16 %v106, %v105
    %v122 = vpack.c.b16 %v108, %v107
    %v123 = vpack.c.b16 %v110, %v109
    %v124 = vpack.c.b16 %v112, %v111
    %v125 = vpack.c.b16 %v114, %v113
    %v126 = vpack.c.b16 %v116, %v115
    %v127 = vpack.c.b16 %v118, %v117
    %v128 = vpack.c.b16 %v120, %v119
    %v153 = vunpack.c.l.b16 %v73
    %v154 = vunpack.c.l.b16 %v74
    %v155 = vunpack.c.l.b16 %v75
    %v156 = vunpack.c.l.b16 %v76
    %v157 = vunpack.c.l.b16 %v77
    %v158 = vunpack.c.l.b16 %v78
    %v159 = vunpack.c.l.b16 %v79
    %v160 = vunpack.c.l.b16 %v80
    %v161 = vunpack.c.l.b16 %v81
    %v162 = vunpack.c.l.b16 %v82
    %v163 = vunpack.c.l.b16 %v83
    %v164 = vunpack.c.l.b16 %v84
    %v165 = vunpack.c.l.b16 %v85
    %v166 = vunpack.c.l.b16 %v86
    %v167 = vunpack.c.l.b16 %v87
    %v168 = vunpack.c.l.b16 %v88
    %v169 = vpack.c.b16 %v154, %v153
    %v170 = vpack.c.b16 %v156, %v155
    %v171 = vpack.c.b16 %v158, %v157
    %v172 = vpack.c.b16 %v160, %v159
    %v173 = vpack.c.b16 %v162, %v161
    %v174 = vpack.c.b16 %v164, %v163
    %v175 = vpack.c.b16 %v166, %v165
    %v176 = vpack.c.b16 %v168, %v167
    %185 = vmatprep.subr.bf16.mxu0 0
    %186 = vmatpush1.bf16.msra.mxu0 %v169
    %187 = vmatprep.subr.bf16.mxu0 0
    %188 = vmatpush1.bf16.msra.mxu0 %v170
    %189 = vmatprep.subr.bf16.mxu0 0
    %190 = vmatpush1.bf16.msra.mxu0 %v171
    %191 = vmatprep.subr.bf16.mxu0 0
    %192 = vmatpush1.bf16.msra.mxu0 %v172
    %193 = vmatprep.subr.bf16.mxu0 0
    %194 = vmatpush1.bf16.msra.mxu0 %v173
    %195 = vmatprep.subr.bf16.mxu0 0
    %196 = vmatpush1.bf16.msra.mxu0 %v174
    %197 = vmatprep.subr.bf16.mxu0 0
    %198 = vmatpush1.bf16.msra.mxu0 %v175
    %199 = vmatprep.subr.bf16.mxu0 0
    %200 = vmatpush1.bf16.msra.mxu0 %v176
    %201 = vmatprep.subr.bf16.mxu0 0
    %202 = vmatpush1.bf16.msra.mxu0 0
    %203 = vmatprep.subr.bf16.mxu0 0
    %204 = vmatpush1.bf16.msra.mxu0 0
    %205 = vmatprep.subr.bf16.mxu0 0
    %206 = vmatpush1.bf16.msra.mxu0 0
    %207 = vmatprep.subr.bf16.mxu0 0
    %208 = vmatpush1.bf16.msra.mxu0 0
    %209 = vmatprep.subr.bf16.mxu0 0
    %210 = vmatpush1.bf16.msra.mxu0 0
    %211 = vmatprep.subr.bf16.mxu0 0
    %212 = vmatpush1.bf16.msra.mxu0 0
    %213 = vmatprep.subr.bf16.mxu0 0
    %214 = vmatpush1.bf16.msra.mxu0 0
    %215 = vmatprep.subr.bf16.mxu0 0
    %216 = vmatpush1.bf16.msra.mxu0 0
    %217 = vmatprep.mubr.bf16.mxu0 0
    %218 = vmatmul.mubr.bf16.gmra.mrb[0].mxu0 %v121
    %v219 = vpop.f32.mrb[0].mxu0
    %v220 = vadd.f32 0.0, %v219
    %v221 = vpop.f32.mrb[0].mxu0
    %v222 = vpop.f32.mrb[0].mxu0
    %v223 = vadd.f32 0.0, %v222
    %v224 = vpop.f32.mrb[0].mxu0
    %225 = vmatprep.mubr.bf16.mxu0 0
    %226 = vmatmul.mubr.bf16.gmra.mrb[0].mxu0 %v122
    %v227 = vpop.f32.mrb[0].mxu0
    %v228 = vadd.f32 0.0, %v227
    %v229 = vpop.f32.mrb[0].mxu0
    %v230 = vpop.f32.mrb[0].mxu0
    %v231 = vadd.f32 0.0, %v230
    %v232 = vpop.f32.mrb[0].mxu0
    %233 = vmatprep.mubr.bf16.mxu0 0
    %234 = vmatmul.mubr.bf16.gmra.mrb[0].mxu0 %v123
    %v235 = vpop.f32.mrb[0].mxu0
    %v236 = vadd.f32 0.0, %v235
    %v237 = vpop.f32.mrb[0].mxu0
    %v238 = vpop.f32.mrb[0].mxu0
    %v239 = vadd.f32 0.0, %v238
    %v240 = vpop.f32.mrb[0].mxu0
    %241 = vmatprep.mubr.bf16.mxu0 0
    %242 = vmatmul.mubr.bf16.gmra.mrb[0].mxu0 %v124
    %v243 = vpop.f32.mrb[0].mxu0
    %v244 = vadd.f32 0.0, %v243
    %v245 = vpop.f32.mrb[0].mxu0
    %v246 = vpop.f32.mrb[0].mxu0
    %v247 = vadd.f32 0.0, %v246
    %v248 = vpop.f32.mrb[0].mxu0
    %249 = vmatprep.mubr.bf16.mxu0 0
    %250 = vmatmul.mubr.bf16.gmra.mrb[0].mxu0 %v125
    %v251 = vpop.f32.mrb[0].mxu0
    %v252 = vadd.f32 0.0, %v251
    %v253 = vpop.f32.mrb[0].mxu0
    %v254 = vpop.f32.mrb[0].mxu0
    %v255 = vadd.f32 0.0, %v254
    %v256 = vpop.f32.mrb[0].mxu0
    %257 = vmatprep.mubr.bf16.mxu0 0
    %258 = vmatmul.mubr.bf16.gmra.mrb[0].mxu0 %v126
    %v259 = vpop.f32.mrb[0].mxu0
    %v260 = vadd.f32 0.0, %v259
    %v261 = vpop.f32.mrb[0].mxu0
    %v262 = vpop.f32.mrb[0].mxu0
    %v263 = vadd.f32 0.0, %v262
    %v264 = vpop.f32.mrb[0].mxu0
    %265 = vmatprep.mubr.bf16.mxu0 0
    %266 = vmatmul.mubr.bf16.gmra.mrb[0].mxu0 %v127
    %v267 = vpop.f32.mrb[0].mxu0
    %v268 = vadd.f32 0.0, %v267
    %v269 = vpop.f32.mrb[0].mxu0
    %v270 = vpop.f32.mrb[0].mxu0
    %v271 = vadd.f32 0.0, %v270
    %v272 = vpop.f32.mrb[0].mxu0
    %273 = vmatprep.mubr.bf16.mxu0 0
    %274 = vmatmul.mubr.bf16.gmra.mrb[0].mxu0 %v128
    %v275 = vpop.f32.mrb[0].mxu0
    %v276 = vadd.f32 0.0, %v275
    %v277 = vpop.f32.mrb[0].mxu0
    %v278 = vpop.f32.mrb[0].mxu0
    %v279 = vadd.f32 0.0, %v278
    %v280 = vpop.f32.mrb[0].mxu0
    %281 = vdwg.mxu0
    %v282 = vld [vmem:[#allocation7] sm:$0xff]
    %v283 = vld [vmem:[#allocation7 + $0x8] sm:$0xff]
    %v284 = vld [vmem:[#allocation7 + $0x10] sm:$0xff]
    %v285 = vld [vmem:[#allocation7 + $0x18] sm:$0xff]
    %v286 = vld [vmem:[#allocation7 + $0x20] sm:$0xff]
    %v287 = vld [vmem:[#allocation7 + $0x28] sm:$0xff]
    %v288 = vld [vmem:[#allocation7 + $0x30] sm:$0xff]
    %v289 = vld [vmem:[#allocation7 + $0x38] sm:$0xff]
    %v290 = vld [vmem:[#allocation7 + $0x40] sm:$0xff]
    %v291 = vld [vmem:[#allocation7 + $0x48] sm:$0xff]
    %v292 = vld [vmem:[#allocation7 + $0x50] sm:$0xff]
    %v293 = vld [vmem:[#allocation7 + $0x58] sm:$0xff]
    %v294 = vld [vmem:[#allocation7 + $0x60] sm:$0xff]
    %v295 = vld [vmem:[#allocation7 + $0x68] sm:$0xff]
    %v296 = vld [vmem:[#allocation7 + $0x70] sm:$0xff]
    %v297 = vld [vmem:[#allocation7 + $0x78] sm:$0xff]
    %299 = vset.pattern.permute.xlu0 0
    %300 = vperm.xlu0 %299, %v282
    %v301 = vpop.permute.xlu0 %300
    %304 = vset.pattern.permute.xlu0 0
    %305 = vperm.xlu0 %304, %v283
    %v306 = vpop.permute.xlu0 %305
    %309 = vset.pattern.permute.xlu0 0
    %310 = vperm.xlu0 %309, %v284
    %v311 = vpop.permute.xlu0 %310
    %314 = vset.pattern.permute.xlu0 0
    %315 = vperm.xlu0 %314, %v285
    %v316 = vpop.permute.xlu0 %315
    %319 = vset.pattern.permute.xlu0 0
    %320 = vperm.xlu0 %319, %v286
    %v321 = vpop.permute.xlu0 %320
    %324 = vset.pattern.permute.xlu0 0
    %325 = vperm.xlu0 %324, %v287
    %v326 = vpop.permute.xlu0 %325
    %329 = vset.pattern.permute.xlu0 0
    %330 = vperm.xlu0 %329, %v288
    %v331 = vpop.permute.xlu0 %330
    %334 = vset.pattern.permute.xlu0 0
    %335 = vperm.xlu0 %334, %v289
    %v336 = vpop.permute.xlu0 %335
    %339 = vset.pattern.permute.xlu0 0
    %340 = vperm.xlu0 %339, %v290
    %v341 = vpop.permute.xlu0 %340
    %344 = vset.pattern.permute.xlu0 0
    %345 = vperm.xlu0 %344, %v291
    %v346 = vpop.permute.xlu0 %345
    %349 = vset.pattern.permute.xlu0 0
    %350 = vperm.xlu0 %349, %v292
    %v351 = vpop.permute.xlu0 %350
    %354 = vset.pattern.permute.xlu0 0
    %355 = vperm.xlu0 %354, %v293
    %v356 = vpop.permute.xlu0 %355
    %359 = vset.pattern.permute.xlu0 0
    %360 = vperm.xlu0 %359, %v294
    %v361 = vpop.permute.xlu0 %360
    %364 = vset.pattern.permute.xlu0 0
    %365 = vperm.xlu0 %364, %v295
    %v366 = vpop.permute.xlu0 %365
    %369 = vset.pattern.permute.xlu0 0
    %370 = vperm.xlu0 %369, %v296
    %v371 = vpop.permute.xlu0 %370
    %374 = vset.pattern.permute.xlu0 0
    %375 = vperm.xlu0 %374, %v297
    %v376 = vpop.permute.xlu0 %375
    %v378 = vmul.f32 %v301, %v220
    %v379 = vmul.f32 %v306, %v223
    %v380 = vmul.f32 %v311, %v228
    %v381 = vmul.f32 %v316, %v231
    %v382 = vmul.f32 %v321, %v236
    %v383 = vmul.f32 %v326, %v239
    %v384 = vmul.f32 %v331, %v244
    %v385 = vmul.f32 %v336, %v247
    %v386 = vmul.f32 %v341, %v252
    %v387 = vmul.f32 %v346, %v255
    %v388 = vmul.f32 %v351, %v260
    %v389 = vmul.f32 %v356, %v263
    %v390 = vmul.f32 %v361, %v268
    %v391 = vmul.f32 %v366, %v271
    %v392 = vmul.f32 %v371, %v276
    %v393 = vmul.f32 %v376, %v279
    %v394 = vpack.c.bf16 %v379, %v378
    %v395 = vpack.c.bf16 %v381, %v380
    %v396 = vpack.c.bf16 %v383, %v382
    %v397 = vpack.c.bf16 %v385, %v384
    %v398 = vpack.c.bf16 %v387, %v386
    %v399 = vpack.c.bf16 %v389, %v388
    %v400 = vpack.c.bf16 %v391, %v390
    %v401 = vpack.c.bf16 %v393, %v392
    %v410 = vunpack.c.l.b16 %v394
    %v411 = vunpack.c.h.b16 %v394
    %v412 = vunpack.c.l.b16 %v395
    %v413 = vunpack.c.h.b16 %v395
    %v414 = vunpack.c.l.b16 %v396
    %v415 = vunpack.c.h.b16 %v396
    %v416 = vunpack.c.l.b16 %v397
    %v417 = vunpack.c.h.b16 %v397
    %v418 = vunpack.c.l.b16 %v398
    %v419 = vunpack.c.h.b16 %v398
    %v420 = vunpack.c.l.b16 %v399
    %v421 = vunpack.c.h.b16 %v399
    %v422 = vunpack.c.l.b16 %v400
    %v423 = vunpack.c.h.b16 %v400
    %v424 = vunpack.c.l.b16 %v401
    %v425 = vunpack.c.h.b16 %v401
    %v426 = vpack.c.b16 %v410, %v410
    %v427 = vpack.c.b16 %v411, %v411
    %v428 = vpack.c.b16 %v412, %v412
    %v429 = vpack.c.b16 %v413, %v413
    %v430 = vpack.c.b16 %v414, %v414
    %v431 = vpack.c.b16 %v415, %v415
    %v432 = vpack.c.b16 %v416, %v416
    %v433 = vpack.c.b16 %v417, %v417
    %v434 = vpack.c.b16 %v418, %v418
    %v435 = vpack.c.b16 %v419, %v419
    %v436 = vpack.c.b16 %v420, %v420
    %v437 = vpack.c.b16 %v421, %v421
    %v438 = vpack.c.b16 %v422, %v422
    %v439 = vpack.c.b16 %v423, %v423
    %v440 = vpack.c.b16 %v424, %v424
    %v441 = vpack.c.b16 %v425, %v425
    %458 = vst [vmem:[#allocation8] sm:$0xf] %v426
    %459 = vst [vmem:[#allocation8 + $0x4] sm:$0xf] %v427
    %460 = vst [vmem:[#allocation8 + $0x8] sm:$0xf] %v428
    %461 = vst [vmem:[#allocation8 + $0xc] sm:$0xf] %v429
    %462 = vst [vmem:[#allocation8 + $0x10] sm:$0xf] %v430
    %463 = vst [vmem:[#allocation8 + $0x14] sm:$0xf] %v431
    %464 = vst [vmem:[#allocation8 + $0x18] sm:$0xf] %v432
    %465 = vst [vmem:[#allocation8 + $0x1c] sm:$0xf] %v433
    %466 = vst [vmem:[#allocation8 + $0x20] sm:$0xf] %v434
    %467 = vst [vmem:[#allocation8 + $0x24] sm:$0xf] %v435
    %468 = vst [vmem:[#allocation8 + $0x28] sm:$0xf] %v436
    %469 = vst [vmem:[#allocation8 + $0x2c] sm:$0xf] %v437
    %470 = vst [vmem:[#allocation8 + $0x30] sm:$0xf] %v438
    %471 = vst [vmem:[#allocation8 + $0x34] sm:$0xf] %v439
    %472 = vst [vmem:[#allocation8 + $0x38] sm:$0xf] %v440
    %473 = vst [vmem:[#allocation8 + $0x3c] sm:$0xf] %v441
    // Predicated region
    $region26: #{_forward.4} parent=1 // pred_check
      _
    $region27: #{_forward.4} parent=1 // pred_check_branch
      %475 = sbr.rel (0) target = $region29
    $region28: #{_forward.4} parent=1 // pred_region
      %s477 = ssub.s32 1024, 1024
      %478 = vsyncadd [#allocation4], %s477
      %s479 = sshll.u32 [#allocation8], 4
      %s480 = int_to_ptr.vmem [resolvable:$true] %s479
      %485 = dma.vmem_to_hbm [thread:$0]  %s480, 1024, %s3, [#allocation4], 64, 64, 4
    $region29: #{_forward.4} parent=1 // pred_fallthru
      _
    // Predicated region
    $region30: #{_forward.4} parent=1 // pred_check
      _
    $region31: #{_forward.4} parent=1 // pred_check_branch
      %487 = sbr.rel (0) target = $region33
    $region32: #{_forward.4} parent=1 // pred_region
      %488 = dma.done [#allocation4], 1024
    $region33: #{_forward.4} parent=1 // pred_fallthru
      _
    %489 = vsyncpa [#allocation3], 1
    %490 = vsyncpa [#allocation6], 1
    %491 = vsyncpa [#allocation4], 1

// kernel: _forward.5
$region0: #{_forward.5}
  #allocation0 [shape = 'u32[]', space=smem, size = 0x4, offset = 0x4, fixed_abs, tag = 'smem constant byte address 0x4 - core index']
  #allocation1 [shape = 'u32[144,128]{1,0:T(1,128)}', space=vmem, size = 0x12000, scoped, tag = 'internal scratch']
  #allocation2 [shape = 'f32[128,128]{1,0:T(8,128)}', space=vmem, size = 0x10000, scoped, tag = 'scratch operand']
  %s0 = inlined_call_operand.hbm [shape: s8[128,128], index: 0, kind: input, shape index: {}]
  %s1 = inlined_call_operand.hbm [shape: bf16[128,128], index: 1, kind: input, shape index: {}]
  %s2 = inlined_call_operand.hbm [shape: f32[128,1], index: 2, kind: input, shape index: {}]
  %s3 = inlined_call_operand.hbm [shape: bf16[128,128], index: 3, kind: output, shape index: {0}]
  %s4 = inlined_call_operand.hbm [shape: f32[1,2,128], index: 4, kind: output, shape index: {1}]
  %5 = xla_tuple %s3, %s4
  %s6 = sld [smem:[#allocation0]]
  $region50: #{_forward.5} parent=0
    _
  %s8 = ssub.s32 1, %s6
  %s9 = scalar_select 0, %s8, %s6
  $region1: #{_forward.5} parent=0
    #allocation3 [shape = 'u8[16384]{0}', space=vmem, size = 0x4000, scoped, tag = 'input window, operand 0, single buffered']
    #allocation4 [shape = 's32[1]{0}', space=sflag, size = 0x4, scoped, tag = 'scoped memory for _forward.5']
    #allocation5 [shape = 's32[1]{0}', space=sflag, size = 0x4, scoped, tag = 'scoped memory for _forward.5']
    #allocation6 [shape = 'u8[32768]{0}', space=vmem, size = 0x8000, scoped, tag = 'input window, operand 1, single buffered']
    #allocation7 [shape = 's32[1]{0}', space=sflag, size = 0x4, scoped, tag = 'scoped memory for _forward.5']
    #allocation8 [shape = 'u8[65536]{0}', space=vmem, size = 0x10000, scoped, tag = 'input window, operand 2, single buffered']
    #allocation9 [shape = 'u8[32768]{0}', space=vmem, size = 0x8000, scoped, tag = 'output window, operand 0, single buffered']
    #allocation10 [shape = 'u8[1024]{0}', space=vmem, size = 0x400, scoped, tag = 'output window, operand 1, single buffered']
    #allocation11 [shape = 's32[1]{0}', space=sflag, size = 0x4, scoped, tag = 'scoped memory for _forward.5']
    %10 = vsyncpa [#allocation4], 0
    %11 = vsyncpa [#allocation7], 0
    %12 = vsyncpa [#allocation5], 0
    %13 = vsyncpa [#allocation11], 0
    // Predicated region
    $region2: #{_forward.5} parent=1 // pred_check
      _
    $region3: #{_forward.5} parent=1 // pred_check_branch
      %15 = sbr.rel (0) target = $region5
    $region4: #{_forward.5} parent=1 // pred_region
      %s17 = ssub.s32 512, 512
      %18 = vsyncadd [#allocation4], %s17
      %s19 = sshll.u32 [#allocation3], 4
      %s20 = int_to_ptr.vmem [resolvable:$true] %s19
      %25 = dma.hbm_to_vmem [thread:$0]  %s0, 512, %s20, [#allocation4], 128, 128, 8
    $region5: #{_forward.5} parent=1 // pred_fallthru
      _
    // Predicated region
    $region6: #{_forward.5} parent=1 // pred_check
      _
    $region7: #{_forward.5} parent=1 // pred_check_branch
      %27 = sbr.rel (0) target = $region9
    $region8: #{_forward.5} parent=1 // pred_region
      %s29 = ssub.s32 1024, 1024
      %30 = vsyncadd [#allocation7], %s29
      %s31 = sshll.u32 [#allocation6], 4
      %s32 = int_to_ptr.vmem [resolvable:$true] %s31
      %37 = dma.hbm_to_vmem [thread:$0]  %s1, 1024, %s32, [#allocation7], 64, 64, 4
    $region9: #{_forward.5} parent=1 // pred_fallthru
      _
    // Predicated region
    $region10: #{_forward.5} parent=1 // pred_check
      _
    $region11: #{_forward.5} parent=1 // pred_check_branch
      %39 = sbr.rel (0) target = $region13
    $region12: #{_forward.5} parent=1 // pred_region
      %s41 = ssub.s32 2048, 2048
      %42 = vsyncadd [#allocation7], %s41
      %s43 = sshll.u32 [#allocation8], 4
      %s44 = int_to_ptr.vmem [resolvable:$true] %s43
      %49 = dma.hbm_to_vmem [thread:$0]  %s2, 2048, %s44, [#allocation7], 128, 128, 8
    $region13: #{_forward.5} parent=1 // pred_fallthru
      _
    // Predicated region
    $region14: #{_forward.5} parent=1 // pred_check
      _
    $region15: #{_forward.5} parent=1 // pred_check_branch
      %51 = sbr.rel (0) target = $region17
    $region16: #{_forward.5} parent=1 // pred_region
      %52 = dma.done [#allocation4], 512
    $region17: #{_forward.5} parent=1 // pred_fallthru
      _
    // Predicated region
    $region18: #{_forward.5} parent=1 // pred_check
      _
    $region19: #{_forward.5} parent=1 // pred_check_branch
      %54 = sbr.rel (0) target = $region21
    $region20: #{_forward.5} parent=1 // pred_region
      %55 = dma.done [#allocation7], 1024
    $region21: #{_forward.5} parent=1 // pred_fallthru
      _
    // Predicated region
    $region22: #{_forward.5} parent=1 // pred_check
      _
    $region23: #{_forward.5} parent=1 // pred_check_branch
      %57 = sbr.rel (0) target = $region25
    $region24: #{_forward.5} parent=1 // pred_region
      %58 = dma.done [#allocation7], 2048
    $region25: #{_forward.5} parent=1 // pred_fallthru
      _
    %p60 = scmp.eq.s32.totalorder 0, 0
    // Predicated region
    $region26: #{_forward.5} parent=1 // pred_check
      %p61 = pneg %p60
    $region27: #{_forward.5} parent=1 // pred_check_branch
      %63 = sbr.rel (%p61) target = $region29
    $region28: #{_forward.5} parent=1 // pred_region
      %64 = vst [vmem:[#allocation2] sm:$0xff] 0.0
      %65 = vst [vmem:[#allocation2 + $0x8] sm:$0xff] 0.0
      %66 = vst [vmem:[#allocation2 + $0x10] sm:$0xff] 0.0
      %67 = vst [vmem:[#allocation2 + $0x18] sm:$0xff] 0.0
      %68 = vst [vmem:[#allocation2 + $0x20] sm:$0xff] 0.0
      %69 = vst [vmem:[#allocation2 + $0x28] sm:$0xff] 0.0
      %70 = vst [vmem:[#allocation2 + $0x30] sm:$0xff] 0.0
      %71 = vst [vmem:[#allocation2 + $0x38] sm:$0xff] 0.0
      %72 = vst [vmem:[#allocation2 + $0x40] sm:$0xff] 0.0
      %73 = vst [vmem:[#allocation2 + $0x48] sm:$0xff] 0.0
      %74 = vst [vmem:[#allocation2 + $0x50] sm:$0xff] 0.0
      %75 = vst [vmem:[#allocation2 + $0x58] sm:$0xff] 0.0
      %76 = vst [vmem:[#allocation2 + $0x60] sm:$0xff] 0.0
      %77 = vst [vmem:[#allocation2 + $0x68] sm:$0xff] 0.0
      %78 = vst [vmem:[#allocation2 + $0x70] sm:$0xff] 0.0
      %79 = vst [vmem:[#allocation2 + $0x78] sm:$0xff] 0.0
    $region29: #{_forward.5} parent=1 // pred_fallthru
      _
    %s80 = smul.u32 0, 128
    %s81 = sshra.s32 %s80, 3
    %s82 = sand.u32 %s80, 7
    %s83 = smul.addr %s81, 4
    %s84 = scalar_lea.vmem [#allocation6], %s83
    %v85 = vld [vmem:[%s84] sm:$0xf]
    %v86 = vld [vmem:[%s84 + $0x4] sm:$0xf]
    %v87 = vld [vmem:[%s84 + $0x8] sm:$0xf]
    %v88 = vld [vmem:[%s84 + $0xc] sm:$0xf]
    %v89 = vld [vmem:[%s84 + $0x10] sm:$0xf]
    %v90 = vld [vmem:[%s84 + $0x14] sm:$0xf]
    %v91 = vld [vmem:[%s84 + $0x18] sm:$0xf]
    %v92 = vld [vmem:[%s84 + $0x1c] sm:$0xf]
    %v93 = vld [vmem:[%s84 + $0x20] sm:$0xf]
    %v94 = vld [vmem:[%s84 + $0x24] sm:$0xf]
    %v95 = vld [vmem:[%s84 + $0x28] sm:$0xf]
    %v96 = vld [vmem:[%s84 + $0x2c] sm:$0xf]
    %v97 = vld [vmem:[%s84 + $0x30] sm:$0xf]
    %v98 = vld [vmem:[%s84 + $0x34] sm:$0xf]
    %v99 = vld [vmem:[%s84 + $0x38] sm:$0xf]
    %v100 = vld [vmem:[%s84 + $0x3c] sm:$0xf]
    %v101 = vld [vmem:[#allocation3] sm:$0xff]
    %v102 = vld [vmem:[#allocation3 + $0x8] sm:$0xff]
    %v103 = vld [vmem:[#allocation3 + $0x10] sm:$0xff]
    %v104 = vld [vmem:[#allocation3 + $0x18] sm:$0xff]
    %v105 = vunpack.c.l.s8.bf16 %v101
    %v106 = vunpack.c.h.s8.bf16 %v101
    %v107 = vunpack.c.l.s8.bf16 %v102
    %v108 = vunpack.c.h.s8.bf16 %v102
    %v109 = vunpack.c.l.s8.bf16 %v103
    %v110 = vunpack.c.h.s8.bf16 %v103
    %v111 = vunpack.c.l.s8.bf16 %v104
    %v112 = vunpack.c.h.s8.bf16 %v104
    %v113 = vld [vmem:[#allocation2] sm:$0xff]
    %v114 = vld [vmem:[#allocation2 + $0x8] sm:$0xff]
    %v115 = vld [vmem:[#allocation2 + $0x10] sm:$0xff]
    %v116 = vld [vmem:[#allocation2 + $0x18] sm:$0xff]
    %v117 = vld [vmem:[#allocation2 + $0x20] sm:$0xff]
    %v118 = vld [vmem:[#allocation2 + $0x28] sm:$0xff]
    %v119 = vld [vmem:[#allocation2 + $0x30] sm:$0xff]
    %v120 = vld [vmem:[#allocation2 + $0x38] sm:$0xff]
    %v121 = vld [vmem:[#allocation2 + $0x40] sm:$0xff]
    %v122 = vld [vmem:[#allocation2 + $0x48] sm:$0xff]
    %v123 = vld [vmem:[#allocation2 + $0x50] sm:$0xff]
    %v124 = vld [vmem:[#allocation2 + $0x58] sm:$0xff]
    %v125 = vld [vmem:[#allocation2 + $0x60] sm:$0xff]
    %v126 = vld [vmem:[#allocation2 + $0x68] sm:$0xff]
    %v127 = vld [vmem:[#allocation2 + $0x70] sm:$0xff]
    %v128 = vld [vmem:[#allocation2 + $0x78] sm:$0xff]
    %v145 = vunpack.c.l.b16 %v85
    %v146 = vunpack.c.l.b16 %v86
    %v147 = vunpack.c.l.b16 %v87
    %v148 = vunpack.c.l.b16 %v88
    %v149 = vunpack.c.l.b16 %v89
    %v150 = vunpack.c.l.b16 %v90
    %v151 = vunpack.c.l.b16 %v91
    %v152 = vunpack.c.l.b16 %v92
    %v153 = vunpack.c.l.b16 %v93
    %v154 = vunpack.c.l.b16 %v94
    %v155 = vunpack.c.l.b16 %v95
    %v156 = vunpack.c.l.b16 %v96
    %v157 = vunpack.c.l.b16 %v97
    %v158 = vunpack.c.l.b16 %v98
    %v159 = vunpack.c.l.b16 %v99
    %v160 = vunpack.c.l.b16 %v100
    %v161 = vpack.c.b16 %v146, %v145
    %v162 = vpack.c.b16 %v148, %v147
    %v163 = vpack.c.b16 %v150, %v149
    %v164 = vpack.c.b16 %v152, %v151
    %v165 = vpack.c.b16 %v154, %v153
    %v166 = vpack.c.b16 %v156, %v155
    %v167 = vpack.c.b16 %v158, %v157
    %v168 = vpack.c.b16 %v160, %v159
    %177 = vmatprep.subr.bf16.mxu0 0
    %178 = vmatpush1.bf16.msra.mxu0 %v161
    %179 = vmatprep.subr.bf16.mxu0 0
    %180 = vmatpush1.bf16.msra.mxu0 %v162
    %181 = vmatprep.subr.bf16.mxu0 0
    %182 = vmatpush1.bf16.msra.mxu0 %v163
    %183 = vmatprep.subr.bf16.mxu0 0
    %184 = vmatpush1.bf16.msra.mxu0 %v164
    %185 = vmatprep.subr.bf16.mxu0 0
    %186 = vmatpush1.bf16.msra.mxu0 %v165
    %187 = vmatprep.subr.bf16.mxu0 0
    %188 = vmatpush1.bf16.msra.mxu0 %v166
    %189 = vmatprep.subr.bf16.mxu0 0
    %190 = vmatpush1.bf16.msra.mxu0 %v167
    %191 = vmatprep.subr.bf16.mxu0 0
    %192 = vmatpush1.bf16.msra.mxu0 %v168
    %193 = vmatprep.subr.bf16.mxu0 0
    %194 = vmatpush1.bf16.msra.mxu0 0
    %195 = vmatprep.subr.bf16.mxu0 0
    %196 = vmatpush1.bf16.msra.mxu0 0
    %197 = vmatprep.subr.bf16.mxu0 0
    %198 = vmatpush1.bf16.msra.mxu0 0
    %199 = vmatprep.subr.bf16.mxu0 0
    %200 = vmatpush1.bf16.msra.mxu0 0
    %201 = vmatprep.subr.bf16.mxu0 0
    %202 = vmatpush1.bf16.msra.mxu0 0
    %203 = vmatprep.subr.bf16.mxu0 0
    %204 = vmatpush1.bf16.msra.mxu0 0
    %205 = vmatprep.subr.bf16.mxu0 0
    %206 = vmatpush1.bf16.msra.mxu0 0
    %207 = vmatprep.subr.bf16.mxu0 0
    %208 = vmatpush1.bf16.msra.mxu0 0
    %209 = vmatprep.mubr.bf16.mxu0 0
    %210 = vmatmul.mubr.bf16.gmra.mrb[0].mxu0 %v105
    %v211 = vpop.f32.mrb[0].mxu0
    %v212 = vadd.f32 0.0, %v211
    %v213 = vpop.f32.mrb[0].mxu0
    %v214 = vpop.f32.mrb[0].mxu0
    %v215 = vadd.f32 0.0, %v214
    %v216 = vpop.f32.mrb[0].mxu0
    %217 = vmatprep.mubr.bf16.mxu0 0
    %218 = vmatmul.mubr.bf16.gmra.mrb[0].mxu0 %v106
    %v219 = vpop.f32.mrb[0].mxu0
    %v220 = vadd.f32 0.0, %v219
    %v221 = vpop.f32.mrb[0].mxu0
    %v222 = vpop.f32.mrb[0].mxu0
    %v223 = vadd.f32 0.0, %v222
    %v224 = vpop.f32.mrb[0].mxu0
    %225 = vmatprep.mubr.bf16.mxu0 0
    %226 = vmatmul.mubr.bf16.gmra.mrb[0].mxu0 %v107
    %v227 = vpop.f32.mrb[0].mxu0
    %v228 = vadd.f32 0.0, %v227
    %v229 = vpop.f32.mrb[0].mxu0
    %v230 = vpop.f32.mrb[0].mxu0
    %v231 = vadd.f32 0.0, %v230
    %v232 = vpop.f32.mrb[0].mxu0
    %233 = vmatprep.mubr.bf16.mxu0 0
    %234 = vmatmul.mubr.bf16.gmra.mrb[0].mxu0 %v108
    %v235 = vpop.f32.mrb[0].mxu0
    %v236 = vadd.f32 0.0, %v235
    %v237 = vpop.f32.mrb[0].mxu0
    %v238 = vpop.f32.mrb[0].mxu0
    %v239 = vadd.f32 0.0, %v238
    %v240 = vpop.f32.mrb[0].mxu0
    %241 = vmatprep.mubr.bf16.mxu0 0
    %242 = vmatmul.mubr.bf16.gmra.mrb[0].mxu0 %v109
    %v243 = vpop.f32.mrb[0].mxu0
    %v244 = vadd.f32 0.0, %v243
    %v245 = vpop.f32.mrb[0].mxu0
    %v246 = vpop.f32.mrb[0].mxu0
    %v247 = vadd.f32 0.0, %v246
    %v248 = vpop.f32.mrb[0].mxu0
    %249 = vmatprep.mubr.bf16.mxu0 0
    %250 = vmatmul.mubr.bf16.gmra.mrb[0].mxu0 %v110
    %v251 = vpop.f32.mrb[0].mxu0
    %v252 = vadd.f32 0.0, %v251
    %v253 = vpop.f32.mrb[0].mxu0
    %v254 = vpop.f32.mrb[0].mxu0
    %v255 = vadd.f32 0.0, %v254
    %v256 = vpop.f32.mrb[0].mxu0
    %257 = vmatprep.mubr.bf16.mxu0 0
    %258 = vmatmul.mubr.bf16.gmra.mrb[0].mxu0 %v111
    %v259 = vpop.f32.mrb[0].mxu0
    %v260 = vadd.f32 0.0, %v259
    %v261 = vpop.f32.mrb[0].mxu0
    %v262 = vpop.f32.mrb[0].mxu0
    %v263 = vadd.f32 0.0, %v262
    %v264 = vpop.f32.mrb[0].mxu0
    %265 = vmatprep.mubr.bf16.mxu0 0
    %266 = vmatmul.mubr.bf16.gmra.mrb[0].mxu0 %v112
    %v267 = vpop.f32.mrb[0].mxu0
    %v268 = vadd.f32 0.0, %v267
    %v269 = vpop.f32.mrb[0].mxu0
    %v270 = vpop.f32.mrb[0].mxu0
    %v271 = vadd.f32 0.0, %v270
    %v272 = vpop.f32.mrb[0].mxu0
    %273 = vdwg.mxu0
    %v274 = vadd.f32 %v113, %v212
    %v275 = vadd.f32 %v114, %v215
    %v276 = vadd.f32 %v115, %v220
    %v277 = vadd.f32 %v116, %v223
    %v278 = vadd.f32 %v117, %v228
    %v279 = vadd.f32 %v118, %v231
    %v280 = vadd.f32 %v119, %v236
    %v281 = vadd.f32 %v120, %v239
    %v282 = vadd.f32 %v121, %v244
    %v283 = vadd.f32 %v122, %v247
    %v284 = vadd.f32 %v123, %v252
    %v285 = vadd.f32 %v124, %v255
    %v286 = vadd.f32 %v125, %v260
    %v287 = vadd.f32 %v126, %v263
    %v288 = vadd.f32 %v127, %v268
    %v289 = vadd.f32 %v128, %v271
    %290 = vst [vmem:[#allocation2] sm:$0xff] %v274
    %291 = vst [vmem:[#allocation2 + $0x8] sm:$0xff] %v275
    %292 = vst [vmem:[#allocation2 + $0x10] sm:$0xff] %v276
    %293 = vst [vmem:[#allocation2 + $0x18] sm:$0xff] %v277
    %294 = vst [vmem:[#allocation2 + $0x20] sm:$0xff] %v278
    %295 = vst [vmem:[#allocation2 + $0x28] sm:$0xff] %v279
    %296 = vst [vmem:[#allocation2 + $0x30] sm:$0xff] %v280
    %297 = vst [vmem:[#allocation2 + $0x38] sm:$0xff] %v281
    %298 = vst [vmem:[#allocation2 + $0x40] sm:$0xff] %v282
    %299 = vst [vmem:[#allocation2 + $0x48] sm:$0xff] %v283
    %300 = vst [vmem:[#allocation2 + $0x50] sm:$0xff] %v284
    %301 = vst [vmem:[#allocation2 + $0x58] sm:$0xff] %v285
    %302 = vst [vmem:[#allocation2 + $0x60] sm:$0xff] %v286
    %303 = vst [vmem:[#allocation2 + $0x68] sm:$0xff] %v287
    %304 = vst [vmem:[#allocation2 + $0x70] sm:$0xff] %v288
    %305 = vst [vmem:[#allocation2 + $0x78] sm:$0xff] %v289
    // Predicated region
    $region30: #{_forward.5} parent=1 // pred_check
      %p306 = pneg %p60
    $region31: #{_forward.5} parent=1 // pred_check_branch
      %308 = sbr.rel (%p306) target = $region33
    $region32: #{_forward.5} parent=1 // pred_region
      %v309 = vld [vmem:[#allocation8] sm:$0xff]
      %v310 = vld [vmem:[#allocation8 + $0x8] sm:$0xff]
      %v311 = vld [vmem:[#allocation8 + $0x10] sm:$0xff]
      %v312 = vld [vmem:[#allocation8 + $0x18] sm:$0xff]
      %v313 = vld [vmem:[#allocation8 + $0x20] sm:$0xff]
      %v314 = vld [vmem:[#allocation8 + $0x28] sm:$0xff]
      %v315 = vld [vmem:[#allocation8 + $0x30] sm:$0xff]
      %v316 = vld [vmem:[#allocation8 + $0x38] sm:$0xff]
      %v317 = vld [vmem:[#allocation8 + $0x40] sm:$0xff]
      %v318 = vld [vmem:[#allocation8 + $0x48] sm:$0xff]
      %v319 = vld [vmem:[#allocation8 + $0x50] sm:$0xff]
      %v320 = vld [vmem:[#allocation8 + $0x58] sm:$0xff]
      %v321 = vld [vmem:[#allocation8 + $0x60] sm:$0xff]
      %v322 = vld [vmem:[#allocation8 + $0x68] sm:$0xff]
      %v323 = vld [vmem:[#allocation8 + $0x70] sm:$0xff]
      %v324 = vld [vmem:[#allocation8 + $0x78] sm:$0xff]
      %v325 = vld [vmem:[#allocation2] sm:$0xff]
      %v326 = vld [vmem:[#allocation2 + $0x8] sm:$0xff]
      %v327 = vld [vmem:[#allocation2 + $0x10] sm:$0xff]
      %v328 = vld [vmem:[#allocation2 + $0x18] sm:$0xff]
      %v329 = vld [vmem:[#allocation2 + $0x20] sm:$0xff]
      %v330 = vld [vmem:[#allocation2 + $0x28] sm:$0xff]
      %v331 = vld [vmem:[#allocation2 + $0x30] sm:$0xff]
      %v332 = vld [vmem:[#allocation2 + $0x38] sm:$0xff]
      %v333 = vld [vmem:[#allocation2 + $0x40] sm:$0xff]
      %v334 = vld [vmem:[#allocation2 + $0x48] sm:$0xff]
      %v335 = vld [vmem:[#allocation2 + $0x50] sm:$0xff]
      %v336 = vld [vmem:[#allocation2 + $0x58] sm:$0xff]
      %v337 = vld [vmem:[#allocation2 + $0x60] sm:$0xff]
      %v338 = vld [vmem:[#allocation2 + $0x68] sm:$0xff]
      %v339 = vld [vmem:[#allocation2 + $0x70] sm:$0xff]
      %v340 = vld [vmem:[#allocation2 + $0x78] sm:$0xff]
      %342 = vset.pattern.permute.xlu0 0
      %343 = vperm.xlu0 %342, %v309
      %v344 = vpop.permute.xlu0 %343
      %347 = vset.pattern.permute.xlu0 0
      %348 = vperm.xlu0 %347, %v310
      %v349 = vpop.permute.xlu0 %348
      %352 = vset.pattern.permute.xlu0 0
      %353 = vperm.xlu0 %352, %v311
      %v354 = vpop.permute.xlu0 %353
      %357 = vset.pattern.permute.xlu0 0
      %358 = vperm.xlu0 %357, %v312
      %v359 = vpop.permute.xlu0 %358
      %362 = vset.pattern.permute.xlu0 0
      %363 = vperm.xlu0 %362, %v313
      %v364 = vpop.permute.xlu0 %363
      %367 = vset.pattern.permute.xlu0 0
      %368 = vperm.xlu0 %367, %v314
      %v369 = vpop.permute.xlu0 %368
      %372 = vset.pattern.permute.xlu0 0
      %373 = vperm.xlu0 %372, %v315
      %v374 = vpop.permute.xlu0 %373
      %377 = vset.pattern.permute.xlu0 0
      %378 = vperm.xlu0 %377, %v316
      %v379 = vpop.permute.xlu0 %378
      %382 = vset.pattern.permute.xlu0 0
      %383 = vperm.xlu0 %382, %v317
      %v384 = vpop.permute.xlu0 %383
      %387 = vset.pattern.permute.xlu0 0
      %388 = vperm.xlu0 %387, %v318
      %v389 = vpop.permute.xlu0 %388
      %392 = vset.pattern.permute.xlu0 0
      %393 = vperm.xlu0 %392, %v319
      %v394 = vpop.permute.xlu0 %393
      %397 = vset.pattern.permute.xlu0 0
      %398 = vperm.xlu0 %397, %v320
      %v399 = vpop.permute.xlu0 %398
      %402 = vset.pattern.permute.xlu0 0
      %403 = vperm.xlu0 %402, %v321
      %v404 = vpop.permute.xlu0 %403
      %407 = vset.pattern.permute.xlu0 0
      %408 = vperm.xlu0 %407, %v322
      %v409 = vpop.permute.xlu0 %408
      %412 = vset.pattern.permute.xlu0 0
      %413 = vperm.xlu0 %412, %v323
      %v414 = vpop.permute.xlu0 %413
      %417 = vset.pattern.permute.xlu0 0
      %418 = vperm.xlu0 %417, %v324
      %v419 = vpop.permute.xlu0 %418
      %v421 = vmul.f32 %v344, %v325
      %v422 = vmul.f32 %v349, %v326
      %v423 = vmul.f32 %v354, %v327
      %v424 = vmul.f32 %v359, %v328
      %v425 = vmul.f32 %v364, %v329
      %v426 = vmul.f32 %v369, %v330
      %v427 = vmul.f32 %v374, %v331
      %v428 = vmul.f32 %v379, %v332
      %v429 = vmul.f32 %v384, %v333
      %v430 = vmul.f32 %v389, %v334
      %v431 = vmul.f32 %v394, %v335
      %v432 = vmul.f32 %v399, %v336
      %v433 = vmul.f32 %v404, %v337
      %v434 = vmul.f32 %v409, %v338
      %v435 = vmul.f32 %v414, %v339
      %v436 = vmul.f32 %v419, %v340
      %v437 = vadd.f32 %v421, %v422
      %v438 = vadd.f32 %v437, %v423
      %v439 = vadd.f32 %v438, %v424
      %v440 = vadd.f32 %v439, %v425
      %v441 = vadd.f32 %v440, %v426
      %v442 = vadd.f32 %v441, %v427
      %v443 = vadd.f32 %v442, %v428
      %v444 = vadd.f32 %v443, %v429
      %v445 = vadd.f32 %v444, %v430
      %v446 = vadd.f32 %v445, %v431
      %v447 = vadd.f32 %v446, %v432
      %v448 = vadd.f32 %v447, %v433
      %v449 = vadd.f32 %v448, %v434
      %v450 = vadd.f32 %v449, %v435
      %v451 = vadd.f32 %v450, %v436
      %v452 = vrot.slane %v451, 4
      %v453 = vadd.f32 %v451, %v452
      %v454 = vrot.slane %v453, 2
      %v455 = vadd.f32 %v453, %v454
      %v456 = vrot.slane %v455, 1
      %v457 = vadd.f32 %v455, %v456
      %v458 = vmul.f32 %v421, %v421
      %v459 = vmul.f32 %v422, %v422
      %v460 = vmul.f32 %v423, %v423
      %v461 = vmul.f32 %v424, %v424
      %v462 = vmul.f32 %v425, %v425
      %v463 = vmul.f32 %v426, %v426
      %v464 = vmul.f32 %v427, %v427
      %v465 = vmul.f32 %v428, %v428
      %v466 = vmul.f32 %v429, %v429
      %v467 = vmul.f32 %v430, %v430
      %v468 = vmul.f32 %v431, %v431
      %v469 = vmul.f32 %v432, %v432
      %v470 = vmul.f32 %v433, %v433
      %v471 = vmul.f32 %v434, %v434
      %v472 = vmul.f32 %v435, %v435
      %v473 = vmul.f32 %v436, %v436
      %v474 = vadd.f32 %v458, %v459
      %v475 = vadd.f32 %v474, %v460
      %v476 = vadd.f32 %v475, %v461
      %v477 = vadd.f32 %v476, %v462
      %v478 = vadd.f32 %v477, %v463
      %v479 = vadd.f32 %v478, %v464
      %v480 = vadd.f32 %v479, %v465
      %v481 = vadd.f32 %v480, %v466
      %v482 = vadd.f32 %v481, %v467
      %v483 = vadd.f32 %v482, %v468
      %v484 = vadd.f32 %v483, %v469
      %v485 = vadd.f32 %v484, %v470
      %v486 = vadd.f32 %v485, %v471
      %v487 = vadd.f32 %v486, %v472
      %v488 = vadd.f32 %v487, %v473
      %v489 = vrot.slane %v488, 4
      %v490 = vadd.f32 %v488, %v489
      %v491 = vrot.slane %v490, 2
      %v492 = vadd.f32 %v490, %v491
      %v493 = vrot.slane %v492, 1
      %v494 = vadd.f32 %v492, %v493
      %vm495 = vcmask 1040384
      %v496 = vsel %vm495, %v457, %v494
      %497 = vst [vmem:[#allocation10] sm:$0x3] %v496
      %v498 = vpack.c.bf16 %v422, %v421
      %v499 = vpack.c.bf16 %v424, %v423
      %v500 = vpack.c.bf16 %v426, %v425
      %v501 = vpack.c.bf16 %v428, %v427
      %v502 = vpack.c.bf16 %v430, %v429
      %v503 = vpack.c.bf16 %v432, %v431
      %v504 = vpack.c.bf16 %v434, %v433
      %v505 = vpack.c.bf16 %v436, %v435
      %v514 = vunpack.c.l.b16 %v498
      %v515 = vunpack.c.h.b16 %v498
      %v516 = vunpack.c.l.b16 %v499
      %v517 = vunpack.c.h.b16 %v499
      %v518 = vunpack.c.l.b16 %v500
      %v519 = vunpack.c.h.b16 %v500
      %v520 = vunpack.c.l.b16 %v501
      %v521 = vunpack.c.h.b16 %v501
      %v522 = vunpack.c.l.b16 %v502
      %v523 = vunpack.c.h.b16 %v502
      %v524 = vunpack.c.l.b16 %v503
      %v525 = vunpack.c.h.b16 %v503
      %v526 = vunpack.c.l.b16 %v504
      %v527 = vunpack.c.h.b16 %v504
      %v528 = vunpack.c.l.b16 %v505
      %v529 = vunpack.c.h.b16 %v505
      %v530 = vpack.c.b16 %v514, %v514
      %v531 = vpack.c.b16 %v515, %v515
      %v532 = vpack.c.b16 %v516, %v516
      %v533 = vpack.c.b16 %v517, %v517
      %v534 = vpack.c.b16 %v518, %v518
      %v535 = vpack.c.b16 %v519, %v519
      %v536 = vpack.c.b16 %v520, %v520
      %v537 = vpack.c.b16 %v521, %v521
      %v538 = vpack.c.b16 %v522, %v522
      %v539 = vpack.c.b16 %v523, %v523
      %v540 = vpack.c.b16 %v524, %v524
      %v541 = vpack.c.b16 %v525, %v525
      %v542 = vpack.c.b16 %v526, %v526
      %v543 = vpack.c.b16 %v527, %v527
      %v544 = vpack.c.b16 %v528, %v528
      %v545 = vpack.c.b16 %v529, %v529
      %562 = vst [vmem:[#allocation9] sm:$0xf] %v530
      %563 = vst [vmem:[#allocation9 + $0x4] sm:$0xf] %v531
      %564 = vst [vmem:[#allocation9 + $0x8] sm:$0xf] %v532
      %565 = vst [vmem:[#allocation9 + $0xc] sm:$0xf] %v533
      %566 = vst [vmem:[#allocation9 + $0x10] sm:$0xf] %v534
      %567 = vst [vmem:[#allocation9 + $0x14] sm:$0xf] %v535
      %568 = vst [vmem:[#allocation9 + $0x18] sm:$0xf] %v536
      %569 = vst [vmem:[#allocation9 + $0x1c] sm:$0xf] %v537
      %570 = vst [vmem:[#allocation9 + $0x20] sm:$0xf] %v538
      %571 = vst [vmem:[#allocation9 + $0x24] sm:$0xf] %v539
      %572 = vst [vmem:[#allocation9 + $0x28] sm:$0xf] %v540
      %573 = vst [vmem:[#allocation9 + $0x2c] sm:$0xf] %v541
      %574 = vst [vmem:[#allocation9 + $0x30] sm:$0xf] %v542
      %575 = vst [vmem:[#allocation9 + $0x34] sm:$0xf] %v543
      %576 = vst [vmem:[#allocation9 + $0x38] sm:$0xf] %v544
      %577 = vst [vmem:[#allocation9 + $0x3c] sm:$0xf] %v545
    $region33: #{_forward.5} parent=1 // pred_fallthru
      _
    // Predicated region
    $region34: #{_forward.5} parent=1 // pred_check
      _
    $region35: #{_forward.5} parent=1 // pred_check_branch
      %579 = sbr.rel (0) target = $region37
    $region36: #{_forward.5} parent=1 // pred_region
      %s581 = ssub.s32 1024, 1024
      %582 = vsyncadd [#allocation5], %s581
      %s583 = sshll.u32 [#allocation9], 4
      %s584 = int_to_ptr.vmem [resolvable:$true] %s583
      %589 = dma.vmem_to_hbm [thread:$0]  %s584, 1024, %s3, [#allocation5], 64, 64, 4
    $region37: #{_forward.5} parent=1 // pred_fallthru
      _
    // Predicated region
    $region38: #{_forward.5} parent=1 // pred_check
      _
    $region39: #{_forward.5} parent=1 // pred_check_branch
      %591 = sbr.rel (0) target = $region41
    $region40: #{_forward.5} parent=1 // pred_region
      %s593 = ssub.s32 32, 32
      %594 = vsyncadd [#allocation11], %s593
      %s596 = sshll.u32 [#allocation10], 4
      %s597 = int_to_ptr.vmem [resolvable:$true] %s596
      %599 = dma.vmem_to_hbm [thread:$0]  %s597, 32, %s4, [#allocation11]
    $region41: #{_forward.5} parent=1 // pred_fallthru
      _
    // Predicated region
    $region42: #{_forward.5} parent=1 // pred_check
      _
    $region43: #{_forward.5} parent=1 // pred_check_branch
      %601 = sbr.rel (0) target = $region45
    $region44: #{_forward.5} parent=1 // pred_region
      %602 = dma.done [#allocation5], 1024
    $region45: #{_forward.5} parent=1 // pred_fallthru
      _
    // Predicated region
    $region46: #{_forward.5} parent=1 // pred_check
      _
    $region47: #{_forward.5} parent=1 // pred_check_branch
      %604 = sbr.rel (0) target = $region49
    $region48: #{_forward.5} parent=1 // pred_region
      %605 = dma.done [#allocation11], 32
    $region49: #{_forward.5} parent=1 // pred_fallthru
      _
    %606 = vsyncpa [#allocation4], 1
    %607 = vsyncpa [#allocation7], 1
    %608 = vsyncpa [#allocation5], 1
    %609 = vsyncpa [#allocation11], 1

// kernel: _forward.7
$region0: #{_forward.7}
  #allocation0 [shape = 'u32[]', space=smem, size = 0x4, offset = 0x4, fixed_abs, tag = 'smem constant byte address 0x4 - core index']
  #allocation1 [shape = 'u32[144,128]{1,0:T(1,128)}', space=vmem, size = 0x12000, scoped, tag = 'internal scratch']
  #allocation2 [shape = 'f32[128,128]{1,0:T(8,128)}', space=vmem, size = 0x10000, scoped, tag = 'scratch operand']
  %s0 = inlined_call_operand.hbm [shape: s8[128,128], index: 0, kind: input, shape index: {}]
  %s1 = inlined_call_operand.hbm [shape: bf16[128,128], index: 1, kind: input, shape index: {}]
  %s2 = inlined_call_operand.hbm [shape: f32[128,1], index: 2, kind: input, shape index: {}]
  %s3 = inlined_call_operand.hbm [shape: bf16[128,128], index: 3, kind: input, shape index: {}]
  %s4 = inlined_call_operand.hbm [shape: f32[1,128], index: 4, kind: input, shape index: {}]
  %s5 = inlined_call_operand.hbm [shape: f32[128,128], index: 5, kind: output, shape index: {}]
  %s6 = sld [smem:[#allocation0]]
  $region58: #{_forward.7} parent=0
    _
  %s8 = ssub.s32 1, %s6
  %s9 = scalar_select 0, %s8, %s6
  $region1: #{_forward.7} parent=0
    #allocation3 [shape = 'u8[16384]{0}', space=vmem, size = 0x4000, scoped, tag = 'input window, operand 0, single buffered']
    #allocation4 [shape = 's32[1]{0}', space=sflag, size = 0x4, scoped, tag = 'scoped memory for _forward.7']
    #allocation5 [shape = 's32[1]{0}', space=sflag, size = 0x4, scoped, tag = 'scoped memory for _forward.7']
    #allocation6 [shape = 'u8[32768]{0}', space=vmem, size = 0x8000, scoped, tag = 'input window, operand 1, single buffered']
    #allocation7 [shape = 's32[1]{0}', space=sflag, size = 0x4, scoped, tag = 'scoped memory for _forward.7']
    #allocation8 [shape = 'u8[65536]{0}', space=vmem, size = 0x10000, scoped, tag = 'input window, operand 2, single buffered']
    #allocation9 [shape = 'u8[32768]{0}', space=vmem, size = 0x8000, scoped, tag = 'input window, operand 3, single buffered']
    #allocation10 [shape = 's32[1]{0}', space=sflag, size = 0x4, scoped, tag = 'scoped memory for _forward.7']
    #allocation11 [shape = 'u8[512]{0}', space=vmem, size = 0x400, scoped, tag = 'input window, operand 4, single buffered']
    #allocation12 [shape = 'u8[65536]{0}', space=vmem, size = 0x10000, scoped, tag = 'output window, operand 0, single buffered']
    %10 = vsyncpa [#allocation4], 0
    %11 = vsyncpa [#allocation7], 0
    %12 = vsyncpa [#allocation10], 0
    %13 = vsyncpa [#allocation5], 0
    // Predicated region
    $region2: #{_forward.7} parent=1 // pred_check
      _
    $region3: #{_forward.7} parent=1 // pred_check_branch
      %15 = sbr.rel (0) target = $region5
    $region4: #{_forward.7} parent=1 // pred_region
      %s17 = ssub.s32 512, 512
      %18 = vsyncadd [#allocation4], %s17
      %s19 = sshll.u32 [#allocation3], 4
      %s20 = int_to_ptr.vmem [resolvable:$true] %s19
      %25 = dma.hbm_to_vmem [thread:$0]  %s0, 512, %s20, [#allocation4], 128, 128, 8
    $region5: #{_forward.7} parent=1 // pred_fallthru
      _
    // Predicated region
    $region6: #{_forward.7} parent=1 // pred_check
      _
    $region7: #{_forward.7} parent=1 // pred_check_branch
      %27 = sbr.rel (0) target = $region9
    $region8: #{_forward.7} parent=1 // pred_region
      %s29 = ssub.s32 1024, 1024
      %30 = vsyncadd [#allocation7], %s29
      %s31 = sshll.u32 [#allocation6], 4
      %s32 = int_to_ptr.vmem [resolvable:$true] %s31
      %37 = dma.hbm_to_vmem [thread:$0]  %s1, 1024, %s32, [#allocation7], 64, 64, 4
    $region9: #{_forward.7} parent=1 // pred_fallthru
      _
    // Predicated region
    $region10: #{_forward.7} parent=1 // pred_check
      _
    $region11: #{_forward.7} parent=1 // pred_check_branch
      %39 = sbr.rel (0) target = $region13
    $region12: #{_forward.7} parent=1 // pred_region
      %s41 = ssub.s32 2048, 2048
      %42 = vsyncadd [#allocation7], %s41
      %s43 = sshll.u32 [#allocation8], 4
      %s44 = int_to_ptr.vmem [resolvable:$true] %s43
      %49 = dma.hbm_to_vmem [thread:$0]  %s2, 2048, %s44, [#allocation7], 128, 128, 8
    $region13: #{_forward.7} parent=1 // pred_fallthru
      _
    // Predicated region
    $region14: #{_forward.7} parent=1 // pred_check
      _
    $region15: #{_forward.7} parent=1 // pred_check_branch
      %51 = sbr.rel (0) target = $region17
    $region16: #{_forward.7} parent=1 // pred_region
      %s53 = ssub.s32 1024, 1024
      %54 = vsyncadd [#allocation10], %s53
      %s55 = sshll.u32 [#allocation9], 4
      %s56 = int_to_ptr.vmem [resolvable:$true] %s55
      %61 = dma.hbm_to_vmem [thread:$0]  %s3, 1024, %s56, [#allocation10], 64, 64, 4
    $region17: #{_forward.7} parent=1 // pred_fallthru
      _
    // Predicated region
    $region18: #{_forward.7} parent=1 // pred_check
      _
    $region19: #{_forward.7} parent=1 // pred_check_branch
      %63 = sbr.rel (0) target = $region21
    $region20: #{_forward.7} parent=1 // pred_region
      %s65 = ssub.s32 16, 16
      %66 = vsyncadd [#allocation10], %s65
      %s68 = sshll.u32 [#allocation11], 4
      %s69 = int_to_ptr.vmem [resolvable:$true] %s68
      %71 = dma.hbm_to_vmem [thread:$0]  %s4, 16, %s69, [#allocation10]
    $region21: #{_forward.7} parent=1 // pred_fallthru
      _
    // Predicated region
    $region22: #{_forward.7} parent=1 // pred_check
      _
    $region23: #{_forward.7} parent=1 // pred_check_branch
      %73 = sbr.rel (0) target = $region25
    $region24: #{_forward.7} parent=1 // pred_region
      %74 = dma.done [#allocation4], 512
    $region25: #{_forward.7} parent=1 // pred_fallthru
      _
    // Predicated region
    $region26: #{_forward.7} parent=1 // pred_check
      _
    $region27: #{_forward.7} parent=1 // pred_check_branch
      %76 = sbr.rel (0) target = $region29
    $region28: #{_forward.7} parent=1 // pred_region
      %77 = dma.done [#allocation7], 1024
    $region29: #{_forward.7} parent=1 // pred_fallthru
      _
    // Predicated region
    $region30: #{_forward.7} parent=1 // pred_check
      _
    $region31: #{_forward.7} parent=1 // pred_check_branch
      %79 = sbr.rel (0) target = $region33
    $region32: #{_forward.7} parent=1 // pred_region
      %80 = dma.done [#allocation7], 2048
    $region33: #{_forward.7} parent=1 // pred_fallthru
      _
    // Predicated region
    $region34: #{_forward.7} parent=1 // pred_check
      _
    $region35: #{_forward.7} parent=1 // pred_check_branch
      %82 = sbr.rel (0) target = $region37
    $region36: #{_forward.7} parent=1 // pred_region
      %83 = dma.done [#allocation10], 1024
    $region37: #{_forward.7} parent=1 // pred_fallthru
      _
    // Predicated region
    $region38: #{_forward.7} parent=1 // pred_check
      _
    $region39: #{_forward.7} parent=1 // pred_check_branch
      %85 = sbr.rel (0) target = $region41
    $region40: #{_forward.7} parent=1 // pred_region
      %86 = dma.done [#allocation10], 16
    $region41: #{_forward.7} parent=1 // pred_fallthru
      _
    %p88 = scmp.eq.s32.totalorder 0, 0
    // Predicated region
    $region42: #{_forward.7} parent=1 // pred_check
      %p89 = pneg %p88
    $region43: #{_forward.7} parent=1 // pred_check_branch
      %91 = sbr.rel (%p89) target = $region45
    $region44: #{_forward.7} parent=1 // pred_region
      %92 = vst [vmem:[#allocation2] sm:$0xff] 0.0
      %93 = vst [vmem:[#allocation2 + $0x8] sm:$0xff] 0.0
      %94 = vst [vmem:[#allocation2 + $0x10] sm:$0xff] 0.0
      %95 = vst [vmem:[#allocation2 + $0x18] sm:$0xff] 0.0
      %96 = vst [vmem:[#allocation2 + $0x20] sm:$0xff] 0.0
      %97 = vst [vmem:[#allocation2 + $0x28] sm:$0xff] 0.0
      %98 = vst [vmem:[#allocation2 + $0x30] sm:$0xff] 0.0
      %99 = vst [vmem:[#allocation2 + $0x38] sm:$0xff] 0.0
      %100 = vst [vmem:[#allocation2 + $0x40] sm:$0xff] 0.0
      %101 = vst [vmem:[#allocation2 + $0x48] sm:$0xff] 0.0
      %102 = vst [vmem:[#allocation2 + $0x50] sm:$0xff] 0.0
      %103 = vst [vmem:[#allocation2 + $0x58] sm:$0xff] 0.0
      %104 = vst [vmem:[#allocation2 + $0x60] sm:$0xff] 0.0
      %105 = vst [vmem:[#allocation2 + $0x68] sm:$0xff] 0.0
      %106 = vst [vmem:[#allocation2 + $0x70] sm:$0xff] 0.0
      %107 = vst [vmem:[#allocation2 + $0x78] sm:$0xff] 0.0
    $region45: #{_forward.7} parent=1 // pred_fallthru
      _
    %s108 = smul.u32 0, 128
    %s109 = sshra.s32 %s108, 3
    %s110 = sand.u32 %s108, 7
    %s111 = smul.addr %s109, 4
    %s112 = scalar_lea.vmem [#allocation6], %s111
    %v113 = vld [vmem:[%s112] sm:$0xf]
    %v114 = vld [vmem:[%s112 + $0x4] sm:$0xf]
    %v115 = vld [vmem:[%s112 + $0x8] sm:$0xf]
    %v116 = vld [vmem:[%s112 + $0xc] sm:$0xf]
    %v117 = vld [vmem:[%s112 + $0x10] sm:$0xf]
    %v118 = vld [vmem:[%s112 + $0x14] sm:$0xf]
    %v119 = vld [vmem:[%s112 + $0x18] sm:$0xf]
    %v120 = vld [vmem:[%s112 + $0x1c] sm:$0xf]
    %v121 = vld [vmem:[%s112 + $0x20] sm:$0xf]
    %v122 = vld [vmem:[%s112 + $0x24] sm:$0xf]
    %v123 = vld [vmem:[%s112 + $0x28] sm:$0xf]
    %v124 = vld [vmem:[%s112 + $0x2c] sm:$0xf]
    %v125 = vld [vmem:[%s112 + $0x30] sm:$0xf]
    %v126 = vld [vmem:[%s112 + $0x34] sm:$0xf]
    %v127 = vld [vmem:[%s112 + $0x38] sm:$0xf]
    %v128 = vld [vmem:[%s112 + $0x3c] sm:$0xf]
    %v129 = vld [vmem:[#allocation3] sm:$0xff]
    %v130 = vld [vmem:[#allocation3 + $0x8] sm:$0xff]
    %v131 = vld [vmem:[#allocation3 + $0x10] sm:$0xff]
    %v132 = vld [vmem:[#allocation3 + $0x18] sm:$0xff]
    %v133 = vunpack.c.l.s8.bf16 %v129
    %v134 = vunpack.c.h.s8.bf16 %v129
    %v135 = vunpack.c.l.s8.bf16 %v130
    %v136 = vunpack.c.h.s8.bf16 %v130
    %v137 = vunpack.c.l.s8.bf16 %v131
    %v138 = vunpack.c.h.s8.bf16 %v131
    %v139 = vunpack.c.l.s8.bf16 %v132
    %v140 = vunpack.c.h.s8.bf16 %v132
    %v141 = vld [vmem:[#allocation2] sm:$0xff]
    %v142 = vld [vmem:[#allocation2 + $0x8] sm:$0xff]
    %v143 = vld [vmem:[#allocation2 + $0x10] sm:$0xff]
    %v144 = vld [vmem:[#allocation2 + $0x18] sm:$0xff]
    %v145 = vld [vmem:[#allocation2 + $0x20] sm:$0xff]
    %v146 = vld [vmem:[#allocation2 + $0x28] sm:$0xff]
    %v147 = vld [vmem:[#allocation2 + $0x30] sm:$0xff]
    %v148 = vld [vmem:[#allocation2 + $0x38] sm:$0xff]
    %v149 = vld [vmem:[#allocation2 + $0x40] sm:$0xff]
    %v150 = vld [vmem:[#allocation2 + $0x48] sm:$0xff]
    %v151 = vld [vmem:[#allocation2 + $0x50] sm:$0xff]
    %v152 = vld [vmem:[#allocation2 + $0x58] sm:$0xff]
    %v153 = vld [vmem:[#allocation2 + $0x60] sm:$0xff]
    %v154 = vld [vmem:[#allocation2 + $0x68] sm:$0xff]
    %v155 = vld [vmem:[#allocation2 + $0x70] sm:$0xff]
    %v156 = vld [vmem:[#allocation2 + $0x78] sm:$0xff]
    %v173 = vunpack.c.l.b16 %v113
    %v174 = vunpack.c.l.b16 %v114
    %v175 = vunpack.c.l.b16 %v115
    %v176 = vunpack.c.l.b16 %v116
    %v177 = vunpack.c.l.b16 %v117
    %v178 = vunpack.c.l.b16 %v118
    %v179 = vunpack.c.l.b16 %v119
    %v180 = vunpack.c.l.b16 %v120
    %v181 = vunpack.c.l.b16 %v121
    %v182 = vunpack.c.l.b16 %v122
    %v183 = vunpack.c.l.b16 %v123
    %v184 = vunpack.c.l.b16 %v124
    %v185 = vunpack.c.l.b16 %v125
    %v186 = vunpack.c.l.b16 %v126
    %v187 = vunpack.c.l.b16 %v127
    %v188 = vunpack.c.l.b16 %v128
    %v189 = vpack.c.b16 %v174, %v173
    %v190 = vpack.c.b16 %v176, %v175
    %v191 = vpack.c.b16 %v178, %v177
    %v192 = vpack.c.b16 %v180, %v179
    %v193 = vpack.c.b16 %v182, %v181
    %v194 = vpack.c.b16 %v184, %v183
    %v195 = vpack.c.b16 %v186, %v185
    %v196 = vpack.c.b16 %v188, %v187
    %205 = vmatprep.subr.bf16.mxu0 0
    %206 = vmatpush1.bf16.msra.mxu0 %v189
    %207 = vmatprep.subr.bf16.mxu0 0
    %208 = vmatpush1.bf16.msra.mxu0 %v190
    %209 = vmatprep.subr.bf16.mxu0 0
    %210 = vmatpush1.bf16.msra.mxu0 %v191
    %211 = vmatprep.subr.bf16.mxu0 0
    %212 = vmatpush1.bf16.msra.mxu0 %v192
    %213 = vmatprep.subr.bf16.mxu0 0
    %214 = vmatpush1.bf16.msra.mxu0 %v193
    %215 = vmatprep.subr.bf16.mxu0 0
    %216 = vmatpush1.bf16.msra.mxu0 %v194
    %217 = vmatprep.subr.bf16.mxu0 0
    %218 = vmatpush1.bf16.msra.mxu0 %v195
    %219 = vmatprep.subr.bf16.mxu0 0
    %220 = vmatpush1.bf16.msra.mxu0 %v196
    %221 = vmatprep.subr.bf16.mxu0 0
    %222 = vmatpush1.bf16.msra.mxu0 0
    %223 = vmatprep.subr.bf16.mxu0 0
    %224 = vmatpush1.bf16.msra.mxu0 0
    %225 = vmatprep.subr.bf16.mxu0 0
    %226 = vmatpush1.bf16.msra.mxu0 0
    %227 = vmatprep.subr.bf16.mxu0 0
    %228 = vmatpush1.bf16.msra.mxu0 0
    %229 = vmatprep.subr.bf16.mxu0 0
    %230 = vmatpush1.bf16.msra.mxu0 0
    %231 = vmatprep.subr.bf16.mxu0 0
    %232 = vmatpush1.bf16.msra.mxu0 0
    %233 = vmatprep.subr.bf16.mxu0 0
    %234 = vmatpush1.bf16.msra.mxu0 0
    %235 = vmatprep.subr.bf16.mxu0 0
    %236 = vmatpush1.bf16.msra.mxu0 0
    %237 = vmatprep.mubr.bf16.mxu0 0
    %238 = vmatmul.mubr.bf16.gmra.mrb[0].mxu0 %v133
    %v239 = vpop.f32.mrb[0].mxu0
    %v240 = vadd.f32 0.0, %v239
    %v241 = vpop.f32.mrb[0].mxu0
    %v242 = vpop.f32.mrb[0].mxu0
    %v243 = vadd.f32 0.0, %v242
    %v244 = vpop.f32.mrb[0].mxu0
    %245 = vmatprep.mubr.bf16.mxu0 0
    %246 = vmatmul.mubr.bf16.gmra.mrb[0].mxu0 %v134
    %v247 = vpop.f32.mrb[0].mxu0
    %v248 = vadd.f32 0.0, %v247
    %v249 = vpop.f32.mrb[0].mxu0
    %v250 = vpop.f32.mrb[0].mxu0
    %v251 = vadd.f32 0.0, %v250
    %v252 = vpop.f32.mrb[0].mxu0
    %253 = vmatprep.mubr.bf16.mxu0 0
    %254 = vmatmul.mubr.bf16.gmra.mrb[0].mxu0 %v135
    %v255 = vpop.f32.mrb[0].mxu0
    %v256 = vadd.f32 0.0, %v255
    %v257 = vpop.f32.mrb[0].mxu0
    %v258 = vpop.f32.mrb[0].mxu0
    %v259 = vadd.f32 0.0, %v258
    %v260 = vpop.f32.mrb[0].mxu0
    %261 = vmatprep.mubr.bf16.mxu0 0
    %262 = vmatmul.mubr.bf16.gmra.mrb[0].mxu0 %v136
    %v263 = vpop.f32.mrb[0].mxu0
    %v264 = vadd.f32 0.0, %v263
    %v265 = vpop.f32.mrb[0].mxu0
    %v266 = vpop.f32.mrb[0].mxu0
    %v267 = vadd.f32 0.0, %v266
    %v268 = vpop.f32.mrb[0].mxu0
    %269 = vmatprep.mubr.bf16.mxu0 0
    %270 = vmatmul.mubr.bf16.gmra.mrb[0].mxu0 %v137
    %v271 = vpop.f32.mrb[0].mxu0
    %v272 = vadd.f32 0.0, %v271
    %v273 = vpop.f32.mrb[0].mxu0
    %v274 = vpop.f32.mrb[0].mxu0
    %v275 = vadd.f32 0.0, %v274
    %v276 = vpop.f32.mrb[0].mxu0
    %277 = vmatprep.mubr.bf16.mxu0 0
    %278 = vmatmul.mubr.bf16.gmra.mrb[0].mxu0 %v138
    %v279 = vpop.f32.mrb[0].mxu0
    %v280 = vadd.f32 0.0, %v279
    %v281 = vpop.f32.mrb[0].mxu0
    %v282 = vpop.f32.mrb[0].mxu0
    %v283 = vadd.f32 0.0, %v282
    %v284 = vpop.f32.mrb[0].mxu0
    %285 = vmatprep.mubr.bf16.mxu0 0
    %286 = vmatmul.mubr.bf16.gmra.mrb[0].mxu0 %v139
    %v287 = vpop.f32.mrb[0].mxu0
    %v288 = vadd.f32 0.0, %v287
    %v289 = vpop.f32.mrb[0].mxu0
    %v290 = vpop.f32.mrb[0].mxu0
    %v291 = vadd.f32 0.0, %v290
    %v292 = vpop.f32.mrb[0].mxu0
    %293 = vmatprep.mubr.bf16.mxu0 0
    %294 = vmatmul.mubr.bf16.gmra.mrb[0].mxu0 %v140
    %v295 = vpop.f32.mrb[0].mxu0
    %v296 = vadd.f32 0.0, %v295
    %v297 = vpop.f32.mrb[0].mxu0
    %v298 = vpop.f32.mrb[0].mxu0
    %v299 = vadd.f32 0.0, %v298
    %v300 = vpop.f32.mrb[0].mxu0
    %301 = vdwg.mxu0
    %v302 = vadd.f32 %v141, %v240
    %v303 = vadd.f32 %v142, %v243
    %v304 = vadd.f32 %v143, %v248
    %v305 = vadd.f32 %v144, %v251
    %v306 = vadd.f32 %v145, %v256
    %v307 = vadd.f32 %v146, %v259
    %v308 = vadd.f32 %v147, %v264
    %v309 = vadd.f32 %v148, %v267
    %v310 = vadd.f32 %v149, %v272
    %v311 = vadd.f32 %v150, %v275
    %v312 = vadd.f32 %v151, %v280
    %v313 = vadd.f32 %v152, %v283
    %v314 = vadd.f32 %v153, %v288
    %v315 = vadd.f32 %v154, %v291
    %v316 = vadd.f32 %v155, %v296
    %v317 = vadd.f32 %v156, %v299
    %318 = vst [vmem:[#allocation2] sm:$0xff] %v302
    %319 = vst [vmem:[#allocation2 + $0x8] sm:$0xff] %v303
    %320 = vst [vmem:[#allocation2 + $0x10] sm:$0xff] %v304
    %321 = vst [vmem:[#allocation2 + $0x18] sm:$0xff] %v305
    %322 = vst [vmem:[#allocation2 + $0x20] sm:$0xff] %v306
    %323 = vst [vmem:[#allocation2 + $0x28] sm:$0xff] %v307
    %324 = vst [vmem:[#allocation2 + $0x30] sm:$0xff] %v308
    %325 = vst [vmem:[#allocation2 + $0x38] sm:$0xff] %v309
    %326 = vst [vmem:[#allocation2 + $0x40] sm:$0xff] %v310
    %327 = vst [vmem:[#allocation2 + $0x48] sm:$0xff] %v311
    %328 = vst [vmem:[#allocation2 + $0x50] sm:$0xff] %v312
    %329 = vst [vmem:[#allocation2 + $0x58] sm:$0xff] %v313
    %330 = vst [vmem:[#allocation2 + $0x60] sm:$0xff] %v314
    %331 = vst [vmem:[#allocation2 + $0x68] sm:$0xff] %v315
    %332 = vst [vmem:[#allocation2 + $0x70] sm:$0xff] %v316
    %333 = vst [vmem:[#allocation2 + $0x78] sm:$0xff] %v317
    // Predicated region
    $region46: #{_forward.7} parent=1 // pred_check
      %p334 = pneg %p88
    $region47: #{_forward.7} parent=1 // pred_check_branch
      %336 = sbr.rel (%p334) target = $region49
    $region48: #{_forward.7} parent=1 // pred_region
      %v337 = vld [vmem:[#allocation8] sm:$0xff]
      %v338 = vld [vmem:[#allocation8 + $0x8] sm:$0xff]
      %v339 = vld [vmem:[#allocation8 + $0x10] sm:$0xff]
      %v340 = vld [vmem:[#allocation8 + $0x18] sm:$0xff]
      %v341 = vld [vmem:[#allocation8 + $0x20] sm:$0xff]
      %v342 = vld [vmem:[#allocation8 + $0x28] sm:$0xff]
      %v343 = vld [vmem:[#allocation8 + $0x30] sm:$0xff]
      %v344 = vld [vmem:[#allocation8 + $0x38] sm:$0xff]
      %v345 = vld [vmem:[#allocation8 + $0x40] sm:$0xff]
      %v346 = vld [vmem:[#allocation8 + $0x48] sm:$0xff]
      %v347 = vld [vmem:[#allocation8 + $0x50] sm:$0xff]
      %v348 = vld [vmem:[#allocation8 + $0x58] sm:$0xff]
      %v349 = vld [vmem:[#allocation8 + $0x60] sm:$0xff]
      %v350 = vld [vmem:[#allocation8 + $0x68] sm:$0xff]
      %v351 = vld [vmem:[#allocation8 + $0x70] sm:$0xff]
      %v352 = vld [vmem:[#allocation8 + $0x78] sm:$0xff]
      %v353 = vld [vmem:[#allocation2] sm:$0xff]
      %v354 = vld [vmem:[#allocation2 + $0x8] sm:$0xff]
      %v355 = vld [vmem:[#allocation2 + $0x10] sm:$0xff]
      %v356 = vld [vmem:[#allocation2 + $0x18] sm:$0xff]
      %v357 = vld [vmem:[#allocation2 + $0x20] sm:$0xff]
      %v358 = vld [vmem:[#allocation2 + $0x28] sm:$0xff]
      %v359 = vld [vmem:[#allocation2 + $0x30] sm:$0xff]
      %v360 = vld [vmem:[#allocation2 + $0x38] sm:$0xff]
      %v361 = vld [vmem:[#allocation2 + $0x40] sm:$0xff]
      %v362 = vld [vmem:[#allocation2 + $0x48] sm:$0xff]
      %v363 = vld [vmem:[#allocation2 + $0x50] sm:$0xff]
      %v364 = vld [vmem:[#allocation2 + $0x58] sm:$0xff]
      %v365 = vld [vmem:[#allocation2 + $0x60] sm:$0xff]
      %v366 = vld [vmem:[#allocation2 + $0x68] sm:$0xff]
      %v367 = vld [vmem:[#allocation2 + $0x70] sm:$0xff]
      %v368 = vld [vmem:[#allocation2 + $0x78] sm:$0xff]
      %370 = vset.pattern.permute.xlu0 0
      %371 = vperm.xlu0 %370, %v337
      %v372 = vpop.permute.xlu0 %371
      %375 = vset.pattern.permute.xlu0 0
      %376 = vperm.xlu0 %375, %v338
      %v377 = vpop.permute.xlu0 %376
      %380 = vset.pattern.permute.xlu0 0
      %381 = vperm.xlu0 %380, %v339
      %v382 = vpop.permute.xlu0 %381
      %385 = vset.pattern.permute.xlu0 0
      %386 = vperm.xlu0 %385, %v340
      %v387 = vpop.permute.xlu0 %386
      %390 = vset.pattern.permute.xlu0 0
      %391 = vperm.xlu0 %390, %v341
      %v392 = vpop.permute.xlu0 %391
      %395 = vset.pattern.permute.xlu0 0
      %396 = vperm.xlu0 %395, %v342
      %v397 = vpop.permute.xlu0 %396
      %400 = vset.pattern.permute.xlu0 0
      %401 = vperm.xlu0 %400, %v343
      %v402 = vpop.permute.xlu0 %401
      %405 = vset.pattern.permute.xlu0 0
      %406 = vperm.xlu0 %405, %v344
      %v407 = vpop.permute.xlu0 %406
      %410 = vset.pattern.permute.xlu0 0
      %411 = vperm.xlu0 %410, %v345
      %v412 = vpop.permute.xlu0 %411
      %415 = vset.pattern.permute.xlu0 0
      %416 = vperm.xlu0 %415, %v346
      %v417 = vpop.permute.xlu0 %416
      %420 = vset.pattern.permute.xlu0 0
      %421 = vperm.xlu0 %420, %v347
      %v422 = vpop.permute.xlu0 %421
      %425 = vset.pattern.permute.xlu0 0
      %426 = vperm.xlu0 %425, %v348
      %v427 = vpop.permute.xlu0 %426
      %430 = vset.pattern.permute.xlu0 0
      %431 = vperm.xlu0 %430, %v349
      %v432 = vpop.permute.xlu0 %431
      %435 = vset.pattern.permute.xlu0 0
      %436 = vperm.xlu0 %435, %v350
      %v437 = vpop.permute.xlu0 %436
      %440 = vset.pattern.permute.xlu0 0
      %441 = vperm.xlu0 %440, %v351
      %v442 = vpop.permute.xlu0 %441
      %445 = vset.pattern.permute.xlu0 0
      %446 = vperm.xlu0 %445, %v352
      %v447 = vpop.permute.xlu0 %446
      %v449 = vmul.f32 %v372, %v353
      %v450 = vmul.f32 %v377, %v354
      %v451 = vmul.f32 %v382, %v355
      %v452 = vmul.f32 %v387, %v356
      %v453 = vmul.f32 %v392, %v357
      %v454 = vmul.f32 %v397, %v358
      %v455 = vmul.f32 %v402, %v359
      %v456 = vmul.f32 %v407, %v360
      %v457 = vmul.f32 %v412, %v361
      %v458 = vmul.f32 %v417, %v362
      %v459 = vmul.f32 %v422, %v363
      %v460 = vmul.f32 %v427, %v364
      %v461 = vmul.f32 %v432, %v365
      %v462 = vmul.f32 %v437, %v366
      %v463 = vmul.f32 %v442, %v367
      %v464 = vmul.f32 %v447, %v368
      %v465 = vpack.c.bf16 %v450, %v449
      %v466 = vpack.c.bf16 %v452, %v451
      %v467 = vpack.c.bf16 %v454, %v453
      %v468 = vpack.c.bf16 %v456, %v455
      %v469 = vpack.c.bf16 %v458, %v457
      %v470 = vpack.c.bf16 %v460, %v459
      %v471 = vpack.c.bf16 %v462, %v461
      %v472 = vpack.c.bf16 %v464, %v463
      %v473 = vld [vmem:[#allocation9] sm:$0xf]
      %v474 = vld [vmem:[#allocation9 + $0x4] sm:$0xf]
      %v475 = vld [vmem:[#allocation9 + $0x8] sm:$0xf]
      %v476 = vld [vmem:[#allocation9 + $0xc] sm:$0xf]
      %v477 = vld [vmem:[#allocation9 + $0x10] sm:$0xf]
      %v478 = vld [vmem:[#allocation9 + $0x14] sm:$0xf]
      %v479 = vld [vmem:[#allocation9 + $0x18] sm:$0xf]
      %v480 = vld [vmem:[#allocation9 + $0x1c] sm:$0xf]
      %v481 = vld [vmem:[#allocation9 + $0x20] sm:$0xf]
      %v482 = vld [vmem:[#allocation9 + $0x24] sm:$0xf]
      %v483 = vld [vmem:[#allocation9 + $0x28] sm:$0xf]
      %v484 = vld [vmem:[#allocation9 + $0x2c] sm:$0xf]
      %v485 = vld [vmem:[#allocation9 + $0x30] sm:$0xf]
      %v486 = vld [vmem:[#allocation9 + $0x34] sm:$0xf]
      %v487 = vld [vmem:[#allocation9 + $0x38] sm:$0xf]
      %v488 = vld [vmem:[#allocation9 + $0x3c] sm:$0xf]
      %v489 = vld [vmem:[#allocation11] sm:$0x1]
      %v491 = vlaneseq
      %v492 = vshrl.u32 %v491, 7
      %v493 = vsub.s32 0, %v492
      %v494 = vrot.slane %v489, %v493
      %v512 = vunpack.c.l.b16 %v473
      %v513 = vunpack.c.l.b16 %v474
      %v514 = vunpack.c.l.b16 %v475
      %v515 = vunpack.c.l.b16 %v476
      %v516 = vunpack.c.l.b16 %v477
      %v517 = vunpack.c.l.b16 %v478
      %v518 = vunpack.c.l.b16 %v479
      %v519 = vunpack.c.l.b16 %v480
      %v520 = vunpack.c.l.b16 %v481
      %v521 = vunpack.c.l.b16 %v482
      %v522 = vunpack.c.l.b16 %v483
      %v523 = vunpack.c.l.b16 %v484
      %v524 = vunpack.c.l.b16 %v485
      %v525 = vunpack.c.l.b16 %v486
      %v526 = vunpack.c.l.b16 %v487
      %v527 = vunpack.c.l.b16 %v488
      %v528 = vpack.c.b16 %v513, %v512
      %v529 = vpack.c.b16 %v515, %v514
      %v530 = vpack.c.b16 %v517, %v516
      %v531 = vpack.c.b16 %v519, %v518
      %v532 = vpack.c.b16 %v521, %v520
      %v533 = vpack.c.b16 %v523, %v522
      %v534 = vpack.c.b16 %v525, %v524
      %v535 = vpack.c.b16 %v527, %v526
      %544 = vmatprep.subr.bf16.mxu0 0
      %545 = vmatpush1.bf16.msra.mxu0 %v528
      %546 = vmatprep.subr.bf16.mxu0 0
      %547 = vmatpush1.bf16.msra.mxu0 %v529
      %548 = vmatprep.subr.bf16.mxu0 0
      %549 = vmatpush1.bf16.msra.mxu0 %v530
      %550 = vmatprep.subr.bf16.mxu0 0
      %551 = vmatpush1.bf16.msra.mxu0 %v531
      %552 = vmatprep.subr.bf16.mxu0 0
      %553 = vmatpush1.bf16.msra.mxu0 %v532
      %554 = vmatprep.subr.bf16.mxu0 0
      %555 = vmatpush1.bf16.msra.mxu0 %v533
      %556 = vmatprep.subr.bf16.mxu0 0
      %557 = vmatpush1.bf16.msra.mxu0 %v534
      %558 = vmatprep.subr.bf16.mxu0 0
      %559 = vmatpush1.bf16.msra.mxu0 %v535
      %560 = vmatprep.subr.bf16.mxu0 0
      %561 = vmatpush1.bf16.msra.mxu0 0
      %562 = vmatprep.subr.bf16.mxu0 0
      %563 = vmatpush1.bf16.msra.mxu0 0
      %564 = vmatprep.subr.bf16.mxu0 0
      %565 = vmatpush1.bf16.msra.mxu0 0
      %566 = vmatprep.subr.bf16.mxu0 0
      %567 = vmatpush1.bf16.msra.mxu0 0
      %568 = vmatprep.subr.bf16.mxu0 0
      %569 = vmatpush1.bf16.msra.mxu0 0
      %570 = vmatprep.subr.bf16.mxu0 0
      %571 = vmatpush1.bf16.msra.mxu0 0
      %572 = vmatprep.subr.bf16.mxu0 0
      %573 = vmatpush1.bf16.msra.mxu0 0
      %574 = vmatprep.subr.bf16.mxu0 0
      %575 = vmatpush1.bf16.msra.mxu0 0
      %576 = vmatprep.mubr.bf16.mxu0 0
      %577 = vmatmul.mubr.bf16.gmra.mrb[0].mxu0 %v465
      %v578 = vpop.f32.mrb[0].mxu0
      %v579 = vadd.f32 %v494, %v578
      %v580 = vpop.f32.mrb[0].mxu0
      %v581 = vpop.f32.mrb[0].mxu0
      %v582 = vadd.f32 %v494, %v581
      %v583 = vpop.f32.mrb[0].mxu0
      %584 = vmatprep.mubr.bf16.mxu0 0
      %585 = vmatmul.mubr.bf16.gmra.mrb[0].mxu0 %v466
      %v586 = vpop.f32.mrb[0].mxu0
      %v587 = vadd.f32 %v494, %v586
      %v588 = vpop.f32.mrb[0].mxu0
      %v589 = vpop.f32.mrb[0].mxu0
      %v590 = vadd.f32 %v494, %v589
      %v591 = vpop.f32.mrb[0].mxu0
      %592 = vmatprep.mubr.bf16.mxu0 0
      %593 = vmatmul.mubr.bf16.gmra.mrb[0].mxu0 %v467
      %v594 = vpop.f32.mrb[0].mxu0
      %v595 = vadd.f32 %v494, %v594
      %v596 = vpop.f32.mrb[0].mxu0
      %v597 = vpop.f32.mrb[0].mxu0
      %v598 = vadd.f32 %v494, %v597
      %v599 = vpop.f32.mrb[0].mxu0
      %600 = vmatprep.mubr.bf16.mxu0 0
      %601 = vmatmul.mubr.bf16.gmra.mrb[0].mxu0 %v468
      %v602 = vpop.f32.mrb[0].mxu0
      %v603 = vadd.f32 %v494, %v602
      %v604 = vpop.f32.mrb[0].mxu0
      %v605 = vpop.f32.mrb[0].mxu0
      %v606 = vadd.f32 %v494, %v605
      %v607 = vpop.f32.mrb[0].mxu0
      %608 = vmatprep.mubr.bf16.mxu0 0
      %609 = vmatmul.mubr.bf16.gmra.mrb[0].mxu0 %v469
      %v610 = vpop.f32.mrb[0].mxu0
      %v611 = vadd.f32 %v494, %v610
      %v612 = vpop.f32.mrb[0].mxu0
      %v613 = vpop.f32.mrb[0].mxu0
      %v614 = vadd.f32 %v494, %v613
      %v615 = vpop.f32.mrb[0].mxu0
      %616 = vmatprep.mubr.bf16.mxu0 0
      %617 = vmatmul.mubr.bf16.gmra.mrb[0].mxu0 %v470
      %v618 = vpop.f32.mrb[0].mxu0
      %v619 = vadd.f32 %v494, %v618
      %v620 = vpop.f32.mrb[0].mxu0
      %v621 = vpop.f32.mrb[0].mxu0
      %v622 = vadd.f32 %v494, %v621
      %v623 = vpop.f32.mrb[0].mxu0
      %624 = vmatprep.mubr.bf16.mxu0 0
      %625 = vmatmul.mubr.bf16.gmra.mrb[0].mxu0 %v471
      %v626 = vpop.f32.mrb[0].mxu0
      %v627 = vadd.f32 %v494, %v626
      %v628 = vpop.f32.mrb[0].mxu0
      %v629 = vpop.f32.mrb[0].mxu0
      %v630 = vadd.f32 %v494, %v629
      %v631 = vpop.f32.mrb[0].mxu0
      %632 = vmatprep.mubr.bf16.mxu0 0
      %633 = vmatmul.mubr.bf16.gmra.mrb[0].mxu0 %v472
      %v634 = vpop.f32.mrb[0].mxu0
      %v635 = vadd.f32 %v494, %v634
      %v636 = vpop.f32.mrb[0].mxu0
      %v637 = vpop.f32.mrb[0].mxu0
      %v638 = vadd.f32 %v494, %v637
      %v639 = vpop.f32.mrb[0].mxu0
      %640 = vdwg.mxu0
      %641 = vst [vmem:[#allocation12] sm:$0xff] %v579
      %642 = vst [vmem:[#allocation12 + $0x8] sm:$0xff] %v582
      %643 = vst [vmem:[#allocation12 + $0x10] sm:$0xff] %v587
      %644 = vst [vmem:[#allocation12 + $0x18] sm:$0xff] %v590
      %645 = vst [vmem:[#allocation12 + $0x20] sm:$0xff] %v595
      %646 = vst [vmem:[#allocation12 + $0x28] sm:$0xff] %v598
      %647 = vst [vmem:[#allocation12 + $0x30] sm:$0xff] %v603
      %648 = vst [vmem:[#allocation12 + $0x38] sm:$0xff] %v606
      %649 = vst [vmem:[#allocation12 + $0x40] sm:$0xff] %v611
      %650 = vst [vmem:[#allocation12 + $0x48] sm:$0xff] %v614
      %651 = vst [vmem:[#allocation12 + $0x50] sm:$0xff] %v619
      %652 = vst [vmem:[#allocation12 + $0x58] sm:$0xff] %v622
      %653 = vst [vmem:[#allocation12 + $0x60] sm:$0xff] %v627
      %654 = vst [vmem:[#allocation12 + $0x68] sm:$0xff] %v630
      %655 = vst [vmem:[#allocation12 + $0x70] sm:$0xff] %v635
      %656 = vst [vmem:[#allocation12 + $0x78] sm:$0xff] %v638
    $region49: #{_forward.7} parent=1 // pred_fallthru
      _
    // Predicated region
    $region50: #{_forward.7} parent=1 // pred_check
      _
    $region51: #{_forward.7} parent=1 // pred_check_branch
      %658 = sbr.rel (0) target = $region53
    $region52: #{_forward.7} parent=1 // pred_region
      %s660 = ssub.s32 2048, 2048
      %661 = vsyncadd [#allocation5], %s660
      %s662 = sshll.u32 [#allocation12], 4
      %s663 = int_to_ptr.vmem [resolvable:$true] %s662
      %668 = dma.vmem_to_hbm [thread:$0]  %s663, 2048, %s5, [#allocation5], 128, 128, 8
    $region53: #{_forward.7} parent=1 // pred_fallthru
      _
    // Predicated region
    $region54: #{_forward.7} parent=1 // pred_check
      _
    $region55: #{_forward.7} parent=1 // pred_check_branch
      %670 = sbr.rel (0) target = $region57
    $region56: #{_forward.7} parent=1 // pred_region
      %671 = dma.done [#allocation5], 2048
    $region57: #{_forward.7} parent=1 // pred_fallthru
      _
    %672 = vsyncpa [#allocation4], 1
    %673 = vsyncpa [#allocation7], 1
    %674 = vsyncpa [#allocation10], 1
    %675 = vsyncpa [#allocation5], 1

</llo_original>
